<compile_context>
chip_gen: v7x
topology: tpu7x:2x2x1
jax: 0.10.0
libtpu: 0.0.40
codegen_flags: <defaults>
</compile_context>

<pallas_src>
import functools
import math

import jax
import jax.numpy as jnp
from jax.experimental import pallas as pl
from jax.experimental.pallas import tpu as pltpu


def _layernorm(v, w, b, eps=1e-5):
    mu = jnp.mean(v, axis=-1, keepdims=True)
    var = jnp.mean((v - mu) ** 2, axis=-1, keepdims=True)
    return (v - mu) * jax.lax.rsqrt(var + eps) * w + b


_INV_SQRT2 = 1.0 / math.sqrt(2.0)


def _gelu_exact(v):
    # PyTorch nn.GELU() default = exact erf formulation.
    return 0.5 * v * (1.0 + jax.lax.erf(v * _INV_SQRT2))


def encoder_block_kernel(
    x_ref,
    ln1_w_ref, ln1_b_ref,
    wqkv_ref, bqkv_ref,
    wo_ref, bo_ref,
    ln2_w_ref, ln2_b_ref,
    w1_ref, b1_ref, w2_ref, b2_ref,
    o_ref,
    q_scr, k_scr, v_scr,
    *, n_head, mlp_chunk,
):
    qi = pl.program_id(1)
    S = x_ref.shape[1]
    D = x_ref.shape[2]
    TQ = o_ref.shape[1]
    hd = D // n_head
    cdt = wqkv_ref.dtype                   # MXU operand dtype (bf16 or f32)
    bf16_softmax = cdt == jnp.bfloat16

    # ---- once per batch element: LN1 + single 2-D QKV projection ----
    @pl.when(qi == 0)
    def _():
        xf = x_ref[0].astype(jnp.float32)                         # (S, D)
        hf = _layernorm(xf, ln1_w_ref[...], ln1_b_ref[...])
        qkv = jnp.dot(hf.astype(cdt), wqkv_ref[...],
                      preferred_element_type=jnp.float32)         # (S, 3D)
        qkv = qkv + bqkv_ref[...]           # softmax scale pre-folded into Wq/bq
        q_scr[...] = qkv[:, :D].astype(cdt)                       # (S, D)
        k_scr[...] = qkv[:, D:2 * D].T.astype(cdt)                # (D, S) pre-T
        v_scr[...] = qkv[:, 2 * D:].astype(cdt)                   # (S, D)

    # ---- attention for this query-row tile (per-head accumulation) ----
    i0 = pl.multiple_of(qi * TQ, TQ)
    x_tile = x_ref[0, pl.ds(i0, TQ), :].astype(jnp.float32)       # (TQ, D)

    acc = jnp.zeros((TQ, D), jnp.float32)
    for h in range(n_head):
        c0 = h * hd
        q_h = q_scr[pl.ds(i0, TQ), c0:c0 + hd]                    # (TQ, hd) cdt
        k_h = k_scr[c0:c0 + hd, :]                                # (hd, S)  cdt
        v_h = v_scr[:, c0:c0 + hd]                                # (S, hd)  cdt

        s = jnp.dot(q_h, k_h, preferred_element_type=jnp.float32)  # (TQ, S)
        m = jnp.max(s, axis=-1, keepdims=True)
        if bf16_softmax:
            p = jnp.exp((s - m).astype(jnp.bfloat16))             # bf16 EUP exp
        else:
            p = jnp.exp(s - m)                                    # f32 path
        l = jnp.sum(p.astype(jnp.float32), axis=-1, keepdims=True)

        o_h = jnp.dot(p.astype(cdt), v_h,
                      preferred_element_type=jnp.float32)         # (TQ, hd)
        o_h = o_h * pl.reciprocal(l, approx=bf16_softmax)
        acc = acc + jnp.dot(o_h.astype(cdt), wo_ref[c0:c0 + hd, :],
                            preferred_element_type=jnp.float32)   # (TQ, D)

    x1 = x_tile + acc + bo_ref[...]                               # residual 1

    # ---- MLP branch: x = x + W2(GELU(W1(ln_2(x)))) , hidden dim chunked ----
    h2 = _layernorm(x1, ln2_w_ref[...], ln2_b_ref[...]).astype(cdt)
    D4 = w1_ref.shape[1]
    ch = mlp_chunk if (D4 > mlp_chunk and D4 % mlp_chunk == 0) else D4
    acc2 = jnp.zeros((TQ, D), jnp.float32)
    for c0 in range(0, D4, ch):
        mb = jnp.dot(h2, w1_ref[:, c0:c0 + ch],
                     preferred_element_type=jnp.float32) + b1_ref[:, c0:c0 + ch]
        mb = _gelu_exact(mb).astype(cdt)
        acc2 = acc2 + jnp.dot(mb, w2_ref[c0:c0 + ch, :],
                              preferred_element_type=jnp.float32)

    o_ref[0] = (x1 + acc2 + b2_ref[...]).astype(o_ref.dtype)      # residual 2


def _pick_q_tile(S):
    if S <= 256:
        return S
    # Largest multiple-of-8 divisor <= 256 (keeps working set bounded).
    for t in range(256, 7, -8):
        if S % t == 0:
            return t
    return S  # awkward S with no aligned divisor: whole sequence (correct)


def _vmem_estimate_bytes(S, D, TQ, wbytes, chunk):
    f32 = 4
    D4 = 4 * D
    weights = (3 * D * D + D * D + D * D4 + D4 * D) * wbytes   # single-buffered
    biases = (3 * D + D + D4 + D + 4 * D) * f32
    x_in = 2 * S * D * f32                                      # x block (2 bufs)
    out = 2 * TQ * D * f32
    scratch = 3 * S * D * wbytes
    live = (S * 3 * D * f32              # qkv during the qi==0 phase
            + 2 * TQ * S * f32           # one head's scores + probs
            + 2 * TQ * min(chunk, D4) * f32
            + 6 * TQ * D * f32)
    return weights + biases + x_in + out + scratch + live


def transformer_encoder_block(x, params, n_head, *,
                              weight_dtype=jnp.bfloat16, mlp_chunk=512):
    B, S, D = x.shape
    assert D % n_head == 0
    hd = D // n_head
    D4 = 4 * D
    scale = 1.0 / math.sqrt(hd)
    f32 = jnp.float32

    # PyTorch Linear stores (out, in); the kernel computes x @ W, so transpose.
    wq = params["in_proj_w"][:D].T * scale        # fold softmax scale into Q
    wk = params["in_proj_w"][D:2 * D].T
    wv = params["in_proj_w"][2 * D:].T
    wqkv = jnp.concatenate([wq, wk, wv], axis=1).astype(weight_dtype)  # (D, 3D)
    bqkv = jnp.concatenate([params["in_proj_b"][:D] * scale,
                            params["in_proj_b"][D:2 * D],
                            params["in_proj_b"][2 * D:]]).reshape(1, 3 * D).astype(f32)
    wo = params["out_proj_w"].T.astype(weight_dtype)                   # (D, D)
    bo = params["out_proj_b"].reshape(1, D).astype(f32)
    w1 = params["w1"].T.astype(weight_dtype)                           # (D, 4D)
    b1 = params["b1"].reshape(1, D4).astype(f32)
    w2 = params["w2"].T.astype(weight_dtype)                           # (4D, D)
    b2 = params["b2"].reshape(1, D).astype(f32)
    ln1_w = params["ln1_w"].reshape(1, D).astype(f32)
    ln1_b = params["ln1_b"].reshape(1, D).astype(f32)
    ln2_w = params["ln2_w"].reshape(1, D).astype(f32)
    ln2_b = params["ln2_b"].reshape(1, D).astype(f32)

    param_args = (ln1_w, ln1_b, wqkv, bqkv, wo, bo,
                  ln2_w, ln2_b, w1, b1, w2, b2)

    TQ = _pick_q_tile(S)
    grid = (B, S // TQ)

    in_specs = [pl.BlockSpec((1, S, D), lambda b, q: (b, 0, 0))] + [
        pl.BlockSpec(a.shape, lambda b, q: (0, 0),
                     pipeline_mode=pl.Buffered(1))       # constants: 1 buffer
        for a in param_args
    ]

    scratch = [pltpu.VMEM((S, D), weight_dtype),   # Q
               pltpu.VMEM((D, S), weight_dtype),   # K (pre-transposed)
               pltpu.VMEM((S, D), weight_dtype)]   # V

    wbytes = jnp.dtype(weight_dtype).itemsize
    est = _vmem_estimate_bytes(S, D, TQ, wbytes, mlp_chunk)
    vmem_limit = int(min(100 * 2**20, max(32 * 2**20, round(1.25 * est))))

    kernel = functools.partial(encoder_block_kernel,
                               n_head=n_head, mlp_chunk=mlp_chunk)

    return pl.pallas_call(
        kernel,
        out_shape=jax.ShapeDtypeStruct((B, S, D), x.dtype),
        grid=grid,
        in_specs=in_specs,
        out_specs=pl.BlockSpec((1, TQ, D), lambda b, q: (b, q, 0)),
        scratch_shapes=scratch,
        compiler_params=pltpu.CompilerParams(
            dimension_semantics=("parallel", "arbitrary"),
            vmem_limit_bytes=vmem_limit,
        ),
    )(x, *param_args)


def init_params(key, d_model):
    ks = jax.random.split(key, 12)
    d4 = 4 * d_model
    w = lambda k, shape: 0.02 * jax.random.normal(k, shape, jnp.float32)
    return dict(
        ln1_w=1.0 + 0.1 * jax.random.normal(ks[8], (d_model,), jnp.float32),
        ln1_b=0.1 * jax.random.normal(ks[9], (d_model,), jnp.float32),
        in_proj_w=w(ks[0], (3 * d_model, d_model)),
        in_proj_b=w(ks[1], (3 * d_model,)),
        out_proj_w=w(ks[2], (d_model, d_model)),
        out_proj_b=w(ks[3], (d_model,)),
        ln2_w=1.0 + 0.1 * jax.random.normal(ks[10], (d_model,), jnp.float32),
        ln2_b=0.1 * jax.random.normal(ks[11], (d_model,), jnp.float32),
        w1=w(ks[4], (d4, d_model)),
        b1=w(ks[5], (d4,)),
        w2=w(ks[6], (d_model, d4)),
        b2=w(ks[7], (d_model,)),
    )


def reference(x, p, n_head):
    """Pure-JAX reference matching PyTorch semantics (for correctness check)."""
    B, S, D = x.shape
    hd = D // n_head

    def ln(v, w, b):
        mu = v.mean(-1, keepdims=True)
        var = ((v - mu) ** 2).mean(-1, keepdims=True)
        return (v - mu) / jnp.sqrt(var + 1e-5) * w + b

    h = ln(x, p["ln1_w"], p["ln1_b"])
    qkv = h @ p["in_proj_w"].T + p["in_proj_b"]
    q, k, v = jnp.split(qkv, 3, axis=-1)
    heads = lambda t: t.reshape(B, S, n_head, hd).transpose(0, 2, 1, 3)
    q, k, v = heads(q), heads(k), heads(v)
    s = (q @ jnp.swapaxes(k, -1, -2)) / jnp.sqrt(float(hd))
    a = jax.nn.softmax(s, axis=-1)
    o = (a @ v).transpose(0, 2, 1, 3).reshape(B, S, D)
    o = o @ p["out_proj_w"].T + p["out_proj_b"]
    x = x + o
    h2 = ln(x, p["ln2_w"], p["ln2_b"])
    m = h2 @ p["w1"].T + p["b1"]
    m = 0.5 * m * (1.0 + jax.lax.erf(m / jnp.sqrt(2.0)))
    m = m @ p["w2"].T + p["b2"]
    return x + m


if __name__ == "__main__":
    B, S, D, H = 2, 8, 32, 4
    key = jax.random.PRNGKey(0)
    kx, kp = jax.random.split(key)
    x = jax.random.normal(kx, (B, S, D), jnp.float32)
    params = init_params(kp, D)

    ref = reference(x, params, H)

    # f32-weight path: full-f32 softmax / exact reciprocal -> tight tolerance.
    out = jax.block_until_ready(
        transformer_encoder_block(x, params, H, weight_dtype=jnp.float32))
    assert out.shape == (B, S, D) and out.dtype == jnp.float32
    err = float(jnp.abs(out - ref).max())
    assert jnp.allclose(out, ref, atol=2e-4, rtol=2e-4), err

    # Default bf16-weight / f32-accumulate fast path: looser tolerance.
    out_bf16 = jax.block_until_ready(transformer_encoder_block(x, params, H))
    err16 = float(jnp.abs(out_bf16 - ref).max())
    assert jnp.allclose(out_bf16, ref, atol=5e-2, rtol=5e-2), err16

    print("KERNEL_OK")
</pallas_src>

<mosaic_0001>
module attributes {stable_mosaic.version = 11 : i64} {
  func.func @encoder_block_kernel(%arg0: i32, %arg1: i32, %arg2: memref<1x8x32xf32, #tpu.memory_space<vmem>>, %arg3: memref<1x32xf32, #tpu.memory_space<vmem>>, %arg4: memref<1x32xf32, #tpu.memory_space<vmem>>, %arg5: memref<32x96xf32, #tpu.memory_space<vmem>>, %arg6: memref<1x96xf32, #tpu.memory_space<vmem>>, %arg7: memref<32x32xf32, #tpu.memory_space<vmem>>, %arg8: memref<1x32xf32, #tpu.memory_space<vmem>>, %arg9: memref<1x32xf32, #tpu.memory_space<vmem>>, %arg10: memref<1x32xf32, #tpu.memory_space<vmem>>, %arg11: memref<32x128xf32, #tpu.memory_space<vmem>>, %arg12: memref<1x128xf32, #tpu.memory_space<vmem>>, %arg13: memref<128x32xf32, #tpu.memory_space<vmem>>, %arg14: memref<1x32xf32, #tpu.memory_space<vmem>>, %arg15: memref<1x8x32xf32, #tpu.memory_space<vmem>>, %arg16: memref<8x32xf32, #tpu.memory_space<vmem>>, %arg17: memref<32x8xf32, #tpu.memory_space<vmem>>, %arg18: memref<8x32xf32, #tpu.memory_space<vmem>>) attributes {dimension_semantics = [#tpu.dimension_semantics<parallel>, #tpu.dimension_semantics<arbitrary>], iteration_bounds = array<i64: 2, 1>, scalar_prefetch = 0 : i64, scratch_operands = 3 : i64, tpu.core_type = #tpu.core_type<tc>, window_params = [{transform_indices = @transform_0, window_bounds = array<i64: 1, 8, 32>}, {pipeline_mode = #tpu.pipeline_mode<synchronous>, transform_indices = @transform_1, window_bounds = array<i64: 1, 32>}, {pipeline_mode = #tpu.pipeline_mode<synchronous>, transform_indices = @transform_2, window_bounds = array<i64: 1, 32>}, {pipeline_mode = #tpu.pipeline_mode<synchronous>, transform_indices = @transform_3, window_bounds = array<i64: 32, 96>}, {pipeline_mode = #tpu.pipeline_mode<synchronous>, transform_indices = @transform_4, window_bounds = array<i64: 1, 96>}, {pipeline_mode = #tpu.pipeline_mode<synchronous>, transform_indices = @transform_5, window_bounds = array<i64: 32, 32>}, {pipeline_mode = #tpu.pipeline_mode<synchronous>, transform_indices = @transform_6, window_bounds = array<i64: 1, 32>}, {pipeline_mode = #tpu.pipeline_mode<synchronous>, transform_indices = @transform_7, window_bounds = array<i64: 1, 32>}, {pipeline_mode = #tpu.pipeline_mode<synchronous>, transform_indices = @transform_8, window_bounds = array<i64: 1, 32>}, {pipeline_mode = #tpu.pipeline_mode<synchronous>, transform_indices = @transform_9, window_bounds = array<i64: 32, 128>}, {pipeline_mode = #tpu.pipeline_mode<synchronous>, transform_indices = @transform_10, window_bounds = array<i64: 1, 128>}, {pipeline_mode = #tpu.pipeline_mode<synchronous>, transform_indices = @transform_11, window_bounds = array<i64: 128, 32>}, {pipeline_mode = #tpu.pipeline_mode<synchronous>, transform_indices = @transform_12, window_bounds = array<i64: 1, 32>}, {transform_indices = @transform_13, window_bounds = array<i64: 1, 8, 32>}]} {
    %c0_i32 = arith.constant 0 : i32
    %0 = arith.cmpi eq, %arg1, %c0_i32 : i32
    %1 = arith.extui %0 : i1 to i32
    %c0_i32_0 = arith.constant 0 : i32
    %2 = arith.cmpi ne, %1, %c0_i32_0 : i32
    scf.if %2 {
      %c0_75 = arith.constant 0 : index
      %c0_76 = arith.constant 0 : index
      %c0_77 = arith.constant 0 : index
      %137 = vector.load %arg2[%c0_75, %c0_76, %c0_77] : memref<1x8x32xf32, #tpu.memory_space<vmem>>, vector<1x8x32xf32>
      %138 = vector.shape_cast %137 : vector<1x8x32xf32> to vector<8x32xf32>
      %c0_78 = arith.constant 0 : index
      %c0_79 = arith.constant 0 : index
      %139 = vector.load %arg3[%c0_78, %c0_79] : memref<1x32xf32, #tpu.memory_space<vmem>>, vector<1x32xf32>
      %c0_80 = arith.constant 0 : index
      %c0_81 = arith.constant 0 : index
      %140 = vector.load %arg4[%c0_80, %c0_81] : memref<1x32xf32, #tpu.memory_space<vmem>>, vector<1x32xf32>
      %cst_82 = arith.constant dense<0.000000e+00> : vector<8xf32>
      %141 = vector.multi_reduction <add>, %138, %cst_82 [1] : vector<8x32xf32> to vector<8xf32>
      %142 = vector.shape_cast %141 : vector<8xf32> to vector<8x1xf32>
      %cst_83 = arith.constant 3.200000e+01 : f32
      %143 = vector.broadcast %cst_83 : f32 to vector<8x1xf32>
      %144 = arith.divf %142, %143 : vector<8x1xf32>
      %145 = vector.broadcast %144 : vector<8x1xf32> to vector<8x32xf32>
      %146 = arith.subf %138, %145 : vector<8x32xf32>
      %147 = arith.mulf %146, %146 : vector<8x32xf32>
      %cst_84 = arith.constant dense<0.000000e+00> : vector<8xf32>
      %148 = vector.multi_reduction <add>, %147, %cst_84 [1] : vector<8x32xf32> to vector<8xf32>
      %149 = vector.shape_cast %148 : vector<8xf32> to vector<8x1xf32>
      %cst_85 = arith.constant 3.200000e+01 : f32
      %150 = vector.broadcast %cst_85 : f32 to vector<8x1xf32>
      %151 = arith.divf %149, %150 : vector<8x1xf32>
      %152 = vector.broadcast %144 : vector<8x1xf32> to vector<8x32xf32>
      %153 = arith.subf %138, %152 : vector<8x32xf32>
      %cst_86 = arith.constant 9.99999974E-6 : f32
      %154 = vector.broadcast %cst_86 : f32 to vector<8x1xf32>
      %155 = arith.addf %151, %154 : vector<8x1xf32>
      %156 = math.rsqrt %155 : vector<8x1xf32>
      %157 = vector.broadcast %156 : vector<8x1xf32> to vector<8x32xf32>
      %158 = arith.mulf %153, %157 : vector<8x32xf32>
      %159 = vector.broadcast %139 : vector<1x32xf32> to vector<8x32xf32>
      %160 = arith.mulf %158, %159 : vector<8x32xf32>
      %161 = vector.broadcast %140 : vector<1x32xf32> to vector<8x32xf32>
      %162 = arith.addf %160, %161 : vector<8x32xf32>
      %c0_87 = arith.constant 0 : index
      %c0_88 = arith.constant 0 : index
      %163 = vector.load %arg5[%c0_87, %c0_88] : memref<32x96xf32, #tpu.memory_space<vmem>>, vector<32x96xf32>
      %cst_89 = arith.constant dense<0.000000e+00> : vector<8x96xf32>
      %164 = tpu.matmul %162, %163, %cst_89 {dimension_numbers = #tpu.dot_dimension_numbers<[1], [0], [0], [1], [0, 0, 1, 1], [], []>} : vector<8x32xf32>, vector<32x96xf32>, vector<8x96xf32> -> vector<8x96xf32>
      %c0_90 = arith.constant 0 : index
      %c0_91 = arith.constant 0 : index
      %165 = vector.load %arg6[%c0_90, %c0_91] : memref<1x96xf32, #tpu.memory_space<vmem>>, vector<1x96xf32>
      %166 = vector.broadcast %165 : vector<1x96xf32> to vector<8x96xf32>
      %167 = arith.addf %164, %166 : vector<8x96xf32>
      %168 = vector.extract_strided_slice %167 {offsets = [0, 0], sizes = [8, 32], strides = [1, 1]} : vector<8x96xf32> to vector<8x32xf32>
      %c0_92 = arith.constant 0 : index
      %c0_93 = arith.constant 0 : index
      %169 = vector.load %arg16[%c0_92, %c0_93] : memref<8x32xf32, #tpu.memory_space<vmem>>, vector<8x32xf32>
      tpu.vector_store %arg16[%c0_92, %c0_93], %168 {strides = array<i32>} : memref<8x32xf32, #tpu.memory_space<vmem>>, vector<8x32xf32>,
      %170 = vector.extract_strided_slice %167 {offsets = [0, 32], sizes = [8, 32], strides = [1, 1]} : vector<8x96xf32> to vector<8x32xf32>
      %171 = tpu.transpose %170, [1, 0] : vector<8x32xf32> -> vector<32x8xf32>
      %c0_94 = arith.constant 0 : index
      %c0_95 = arith.constant 0 : index
      %172 = vector.load %arg17[%c0_94, %c0_95] : memref<32x8xf32, #tpu.memory_space<vmem>>, vector<32x8xf32>
      tpu.vector_store %arg17[%c0_94, %c0_95], %171 {strides = array<i32>} : memref<32x8xf32, #tpu.memory_space<vmem>>, vector<32x8xf32>,
      %173 = vector.extract_strided_slice %167 {offsets = [0, 64], sizes = [8, 32], strides = [1, 1]} : vector<8x96xf32> to vector<8x32xf32>
      %c0_96 = arith.constant 0 : index
      %c0_97 = arith.constant 0 : index
      %174 = vector.load %arg18[%c0_96, %c0_97] : memref<8x32xf32, #tpu.memory_space<vmem>>, vector<8x32xf32>
      tpu.vector_store %arg18[%c0_96, %c0_97], %173 {strides = array<i32>} : memref<8x32xf32, #tpu.memory_space<vmem>>, vector<8x32xf32>,
    } else {
    }
    %c8_i32 = arith.constant 8 : i32
    %3 = arith.muli %arg1, %c8_i32 : i32
    %4 = tpu.assume_multiple %3, 8 : i32
    %c0 = arith.constant 0 : index
    %5 = arith.index_cast %4 : i32 to index
    %c0_1 = arith.constant 0 : index
    %6 = vector.load %arg2[%c0, %5, %c0_1] : memref<1x8x32xf32, #tpu.memory_space<vmem>>, vector<1x8x32xf32>
    %7 = vector.shape_cast %6 : vector<1x8x32xf32> to vector<8x32xf32>
    %cst = arith.constant 0.000000e+00 : f32
    %8 = vector.broadcast %cst : f32 to vector<8x32xf32>
    %9 = arith.index_cast %4 : i32 to index
    %c0_2 = arith.constant 0 : index
    %10 = vector.load %arg16[%9, %c0_2] : memref<8x32xf32, #tpu.memory_space<vmem>>, vector<8x8xf32>
    %c0_3 = arith.constant 0 : index
    %c0_4 = arith.constant 0 : index
    %11 = vector.load %arg17[%c0_3, %c0_4] : memref<32x8xf32, #tpu.memory_space<vmem>>, vector<8x8xf32>
    %c0_5 = arith.constant 0 : index
    %c0_6 = arith.constant 0 : index
    %12 = vector.load %arg18[%c0_5, %c0_6] : memref<8x32xf32, #tpu.memory_space<vmem>>, vector<8x8xf32>
    %cst_7 = arith.constant dense<0.000000e+00> : vector<8x8xf32>
    %13 = tpu.matmul %10, %11, %cst_7 {dimension_numbers = #tpu.dot_dimension_numbers<[1], [0], [0], [1], [0, 0, 1, 1], [], []>} : vector<8x8xf32>, vector<8x8xf32>, vector<8x8xf32> -> vector<8x8xf32>
    %cst_8 = arith.constant dense<0xFF800000> : vector<8xf32>
    %14 = vector.multi_reduction <maximumf>, %13, %cst_8 [1] : vector<8x8xf32> to vector<8xf32>
    %15 = vector.shape_cast %14 : vector<8xf32> to vector<8x1xf32>
    %16 = vector.broadcast %15 : vector<8x1xf32> to vector<8x8xf32>
    %17 = arith.subf %13, %16 : vector<8x8xf32>
    %18 = math.exp %17 : vector<8x8xf32>
    %cst_9 = arith.constant dense<0.000000e+00> : vector<8xf32>
    %19 = vector.multi_reduction <add>, %18, %cst_9 [1] : vector<8x8xf32> to vector<8xf32>
    %20 = vector.shape_cast %19 : vector<8xf32> to vector<8x1xf32>
    %cst_10 = arith.constant dense<0.000000e+00> : vector<8x8xf32>
    %21 = tpu.matmul %18, %12, %cst_10 {dimension_numbers = #tpu.dot_dimension_numbers<[1], [0], [0], [1], [0, 0, 1, 1], [], []>} : vector<8x8xf32>, vector<8x8xf32>, vector<8x8xf32> -> vector<8x8xf32>
    %22 = tpu.reciprocal %20 : vector<8x1xf32> -> vector<8x1xf32>
    %23 = vector.broadcast %22 : vector<8x1xf32> to vector<8x8xf32>
    %24 = arith.mulf %21, %23 : vector<8x8xf32>
    %c0_11 = arith.constant 0 : index
    %c0_12 = arith.constant 0 : index
    %25 = vector.load %arg7[%c0_11, %c0_12] : memref<32x32xf32, #tpu.memory_space<vmem>>, vector<8x32xf32>
    %cst_13 = arith.constant dense<0.000000e+00> : vector<8x32xf32>
    %26 = tpu.matmul %24, %25, %cst_13 {dimension_numbers = #tpu.dot_dimension_numbers<[1], [0], [0], [1], [0, 0, 1, 1], [], []>} : vector<8x8xf32>, vector<8x32xf32>, vector<8x32xf32> -> vector<8x32xf32>
    %27 = arith.addf %8, %26 : vector<8x32xf32>
    %28 = arith.index_cast %4 : i32 to index
    %c8 = arith.constant 8 : index
    %29 = vector.load %arg16[%28, %c8] : memref<8x32xf32, #tpu.memory_space<vmem>>, vector<8x8xf32>
    %c8_14 = arith.constant 8 : index
    %c0_15 = arith.constant 0 : index
    %30 = vector.load %arg17[%c8_14, %c0_15] : memref<32x8xf32, #tpu.memory_space<vmem>>, vector<8x8xf32>
    %c0_16 = arith.constant 0 : index
    %c8_17 = arith.constant 8 : index
    %31 = vector.load %arg18[%c0_16, %c8_17] : memref<8x32xf32, #tpu.memory_space<vmem>>, vector<8x8xf32>
    %cst_18 = arith.constant dense<0.000000e+00> : vector<8x8xf32>
    %32 = tpu.matmul %29, %30, %cst_18 {dimension_numbers = #tpu.dot_dimension_numbers<[1], [0], [0], [1], [0, 0, 1, 1], [], []>} : vector<8x8xf32>, vector<8x8xf32>, vector<8x8xf32> -> vector<8x8xf32>
    %cst_19 = arith.constant dense<0xFF800000> : vector<8xf32>
    %33 = vector.multi_reduction <maximumf>, %32, %cst_19 [1] : vector<8x8xf32> to vector<8xf32>
    %34 = vector.shape_cast %33 : vector<8xf32> to vector<8x1xf32>
    %35 = vector.broadcast %34 : vector<8x1xf32> to vector<8x8xf32>
    %36 = arith.subf %32, %35 : vector<8x8xf32>
    %37 = math.exp %36 : vector<8x8xf32>
    %cst_20 = arith.constant dense<0.000000e+00> : vector<8xf32>
    %38 = vector.multi_reduction <add>, %37, %cst_20 [1] : vector<8x8xf32> to vector<8xf32>
    %39 = vector.shape_cast %38 : vector<8xf32> to vector<8x1xf32>
    %cst_21 = arith.constant dense<0.000000e+00> : vector<8x8xf32>
    %40 = tpu.matmul %37, %31, %cst_21 {dimension_numbers = #tpu.dot_dimension_numbers<[1], [0], [0], [1], [0, 0, 1, 1], [], []>} : vector<8x8xf32>, vector<8x8xf32>, vector<8x8xf32> -> vector<8x8xf32>
    %41 = tpu.reciprocal %39 : vector<8x1xf32> -> vector<8x1xf32>
    %42 = vector.broadcast %41 : vector<8x1xf32> to vector<8x8xf32>
    %43 = arith.mulf %40, %42 : vector<8x8xf32>
    %c8_22 = arith.constant 8 : index
    %c0_23 = arith.constant 0 : index
    %44 = vector.load %arg7[%c8_22, %c0_23] : memref<32x32xf32, #tpu.memory_space<vmem>>, vector<8x32xf32>
    %cst_24 = arith.constant dense<0.000000e+00> : vector<8x32xf32>
    %45 = tpu.matmul %43, %44, %cst_24 {dimension_numbers = #tpu.dot_dimension_numbers<[1], [0], [0], [1], [0, 0, 1, 1], [], []>} : vector<8x8xf32>, vector<8x32xf32>, vector<8x32xf32> -> vector<8x32xf32>
    %46 = arith.addf %27, %45 : vector<8x32xf32>
    %47 = arith.index_cast %4 : i32 to index
    %c16 = arith.constant 16 : index
    %48 = vector.load %arg16[%47, %c16] : memref<8x32xf32, #tpu.memory_space<vmem>>, vector<8x8xf32>
    %c16_25 = arith.constant 16 : index
    %c0_26 = arith.constant 0 : index
    %49 = vector.load %arg17[%c16_25, %c0_26] : memref<32x8xf32, #tpu.memory_space<vmem>>, vector<8x8xf32>
    %c0_27 = arith.constant 0 : index
    %c16_28 = arith.constant 16 : index
    %50 = vector.load %arg18[%c0_27, %c16_28] : memref<8x32xf32, #tpu.memory_space<vmem>>, vector<8x8xf32>
    %cst_29 = arith.constant dense<0.000000e+00> : vector<8x8xf32>
    %51 = tpu.matmul %48, %49, %cst_29 {dimension_numbers = #tpu.dot_dimension_numbers<[1], [0], [0], [1], [0, 0, 1, 1], [], []>} : vector<8x8xf32>, vector<8x8xf32>, vector<8x8xf32> -> vector<8x8xf32>
    %cst_30 = arith.constant dense<0xFF800000> : vector<8xf32>
    %52 = vector.multi_reduction <maximumf>, %51, %cst_30 [1] : vector<8x8xf32> to vector<8xf32>
    %53 = vector.shape_cast %52 : vector<8xf32> to vector<8x1xf32>
    %54 = vector.broadcast %53 : vector<8x1xf32> to vector<8x8xf32>
    %55 = arith.subf %51, %54 : vector<8x8xf32>
    %56 = math.exp %55 : vector<8x8xf32>
    %cst_31 = arith.constant dense<0.000000e+00> : vector<8xf32>
    %57 = vector.multi_reduction <add>, %56, %cst_31 [1] : vector<8x8xf32> to vector<8xf32>
    %58 = vector.shape_cast %57 : vector<8xf32> to vector<8x1xf32>
    %cst_32 = arith.constant dense<0.000000e+00> : vector<8x8xf32>
    %59 = tpu.matmul %56, %50, %cst_32 {dimension_numbers = #tpu.dot_dimension_numbers<[1], [0], [0], [1], [0, 0, 1, 1], [], []>} : vector<8x8xf32>, vector<8x8xf32>, vector<8x8xf32> -> vector<8x8xf32>
    %60 = tpu.reciprocal %58 : vector<8x1xf32> -> vector<8x1xf32>
    %61 = vector.broadcast %60 : vector<8x1xf32> to vector<8x8xf32>
    %62 = arith.mulf %59, %61 : vector<8x8xf32>
    %c16_33 = arith.constant 16 : index
    %c0_34 = arith.constant 0 : index
    %63 = vector.load %arg7[%c16_33, %c0_34] : memref<32x32xf32, #tpu.memory_space<vmem>>, vector<8x32xf32>
    %cst_35 = arith.constant dense<0.000000e+00> : vector<8x32xf32>
    %64 = tpu.matmul %62, %63, %cst_35 {dimension_numbers = #tpu.dot_dimension_numbers<[1], [0], [0], [1], [0, 0, 1, 1], [], []>} : vector<8x8xf32>, vector<8x32xf32>, vector<8x32xf32> -> vector<8x32xf32>
    %65 = arith.addf %46, %64 : vector<8x32xf32>
    %66 = arith.index_cast %4 : i32 to index
    %c24 = arith.constant 24 : index
    %67 = vector.load %arg16[%66, %c24] : memref<8x32xf32, #tpu.memory_space<vmem>>, vector<8x8xf32>
    %c24_36 = arith.constant 24 : index
    %c0_37 = arith.constant 0 : index
    %68 = vector.load %arg17[%c24_36, %c0_37] : memref<32x8xf32, #tpu.memory_space<vmem>>, vector<8x8xf32>
    %c0_38 = arith.constant 0 : index
    %c24_39 = arith.constant 24 : index
    %69 = vector.load %arg18[%c0_38, %c24_39] : memref<8x32xf32, #tpu.memory_space<vmem>>, vector<8x8xf32>
    %cst_40 = arith.constant dense<0.000000e+00> : vector<8x8xf32>
    %70 = tpu.matmul %67, %68, %cst_40 {dimension_numbers = #tpu.dot_dimension_numbers<[1], [0], [0], [1], [0, 0, 1, 1], [], []>} : vector<8x8xf32>, vector<8x8xf32>, vector<8x8xf32> -> vector<8x8xf32>
    %cst_41 = arith.constant dense<0xFF800000> : vector<8xf32>
    %71 = vector.multi_reduction <maximumf>, %70, %cst_41 [1] : vector<8x8xf32> to vector<8xf32>
    %72 = vector.shape_cast %71 : vector<8xf32> to vector<8x1xf32>
    %73 = vector.broadcast %72 : vector<8x1xf32> to vector<8x8xf32>
    %74 = arith.subf %70, %73 : vector<8x8xf32>
    %75 = math.exp %74 : vector<8x8xf32>
    %cst_42 = arith.constant dense<0.000000e+00> : vector<8xf32>
    %76 = vector.multi_reduction <add>, %75, %cst_42 [1] : vector<8x8xf32> to vector<8xf32>
    %77 = vector.shape_cast %76 : vector<8xf32> to vector<8x1xf32>
    %cst_43 = arith.constant dense<0.000000e+00> : vector<8x8xf32>
    %78 = tpu.matmul %75, %69, %cst_43 {dimension_numbers = #tpu.dot_dimension_numbers<[1], [0], [0], [1], [0, 0, 1, 1], [], []>} : vector<8x8xf32>, vector<8x8xf32>, vector<8x8xf32> -> vector<8x8xf32>
    %79 = tpu.reciprocal %77 : vector<8x1xf32> -> vector<8x1xf32>
    %80 = vector.broadcast %79 : vector<8x1xf32> to vector<8x8xf32>
    %81 = arith.mulf %78, %80 : vector<8x8xf32>
    %c24_44 = arith.constant 24 : index
    %c0_45 = arith.constant 0 : index
    %82 = vector.load %arg7[%c24_44, %c0_45] : memref<32x32xf32, #tpu.memory_space<vmem>>, vector<8x32xf32>
    %cst_46 = arith.constant dense<0.000000e+00> : vector<8x32xf32>
    %83 = tpu.matmul %81, %82, %cst_46 {dimension_numbers = #tpu.dot_dimension_numbers<[1], [0], [0], [1], [0, 0, 1, 1], [], []>} : vector<8x8xf32>, vector<8x32xf32>, vector<8x32xf32> -> vector<8x32xf32>
    %84 = arith.addf %65, %83 : vector<8x32xf32>
    %85 = arith.addf %7, %84 : vector<8x32xf32>
    %c0_47 = arith.constant 0 : index
    %c0_48 = arith.constant 0 : index
    %86 = vector.load %arg8[%c0_47, %c0_48] : memref<1x32xf32, #tpu.memory_space<vmem>>, vector<1x32xf32>
    %87 = vector.broadcast %86 : vector<1x32xf32> to vector<8x32xf32>
    %88 = arith.addf %85, %87 : vector<8x32xf32>
    %c0_49 = arith.constant 0 : index
    %c0_50 = arith.constant 0 : index
    %89 = vector.load %arg9[%c0_49, %c0_50] : memref<1x32xf32, #tpu.memory_space<vmem>>, vector<1x32xf32>
    %c0_51 = arith.constant 0 : index
    %c0_52 = arith.constant 0 : index
    %90 = vector.load %arg10[%c0_51, %c0_52] : memref<1x32xf32, #tpu.memory_space<vmem>>, vector<1x32xf32>
    %cst_53 = arith.constant dense<0.000000e+00> : vector<8xf32>
    %91 = vector.multi_reduction <add>, %88, %cst_53 [1] : vector<8x32xf32> to vector<8xf32>
    %92 = vector.shape_cast %91 : vector<8xf32> to vector<8x1xf32>
    %cst_54 = arith.constant 3.200000e+01 : f32
    %93 = vector.broadcast %cst_54 : f32 to vector<8x1xf32>
    %94 = arith.divf %92, %93 : vector<8x1xf32>
    %95 = vector.broadcast %94 : vector<8x1xf32> to vector<8x32xf32>
    %96 = arith.subf %88, %95 : vector<8x32xf32>
    %97 = arith.mulf %96, %96 : vector<8x32xf32>
    %cst_55 = arith.constant dense<0.000000e+00> : vector<8xf32>
    %98 = vector.multi_reduction <add>, %97, %cst_55 [1] : vector<8x32xf32> to vector<8xf32>
    %99 = vector.shape_cast %98 : vector<8xf32> to vector<8x1xf32>
    %cst_56 = arith.constant 3.200000e+01 : f32
    %100 = vector.broadcast %cst_56 : f32 to vector<8x1xf32>
    %101 = arith.divf %99, %100 : vector<8x1xf32>
    %102 = vector.broadcast %94 : vector<8x1xf32> to vector<8x32xf32>
    %103 = arith.subf %88, %102 : vector<8x32xf32>
    %cst_57 = arith.constant 9.99999974E-6 : f32
    %104 = vector.broadcast %cst_57 : f32 to vector<8x1xf32>
    %105 = arith.addf %101, %104 : vector<8x1xf32>
    %106 = math.rsqrt %105 : vector<8x1xf32>
    %107 = vector.broadcast %106 : vector<8x1xf32> to vector<8x32xf32>
    %108 = arith.mulf %103, %107 : vector<8x32xf32>
    %109 = vector.broadcast %89 : vector<1x32xf32> to vector<8x32xf32>
    %110 = arith.mulf %108, %109 : vector<8x32xf32>
    %111 = vector.broadcast %90 : vector<1x32xf32> to vector<8x32xf32>
    %112 = arith.addf %110, %111 : vector<8x32xf32>
    %cst_58 = arith.constant 0.000000e+00 : f32
    %113 = vector.broadcast %cst_58 : f32 to vector<8x32xf32>
    %c0_59 = arith.constant 0 : index
    %c0_60 = arith.constant 0 : index
    %114 = vector.load %arg11[%c0_59, %c0_60] : memref<32x128xf32, #tpu.memory_space<vmem>>, vector<32x128xf32>
    %cst_61 = arith.constant dense<0.000000e+00> : vector<8x128xf32>
    %115 = tpu.matmul %112, %114, %cst_61 {dimension_numbers = #tpu.dot_dimension_numbers<[1], [0], [0], [1], [0, 0, 1, 1], [], []>} : vector<8x32xf32>, vector<32x128xf32>, vector<8x128xf32> -> vector<8x128xf32>
    %c0_62 = arith.constant 0 : index
    %c0_63 = arith.constant 0 : index
    %116 = vector.load %arg12[%c0_62, %c0_63] : memref<1x128xf32, #tpu.memory_space<vmem>>, vector<1x128xf32>
    %117 = vector.broadcast %116 : vector<1x128xf32> to vector<8x128xf32>
    %118 = arith.addf %115, %117 : vector<8x128xf32>
    %cst_64 = arith.constant 5.000000e-01 : f32
    %119 = vector.broadcast %cst_64 : f32 to vector<8x128xf32>
    %120 = arith.mulf %119, %118 : vector<8x128xf32>
    %cst_65 = arith.constant 0.707106769 : f32
    %121 = vector.broadcast %cst_65 : f32 to vector<8x128xf32>
    %122 = arith.mulf %118, %121 : vector<8x128xf32>
    %123 = math.erf %122 : vector<8x128xf32>
    %cst_66 = arith.constant 1.000000e+00 : f32
    %124 = vector.broadcast %cst_66 : f32 to vector<8x128xf32>
    %125 = arith.addf %124, %123 : vector<8x128xf32>
    %126 = arith.mulf %120, %125 : vector<8x128xf32>
    %c0_67 = arith.constant 0 : index
    %c0_68 = arith.constant 0 : index
    %127 = vector.load %arg13[%c0_67, %c0_68] : memref<128x32xf32, #tpu.memory_space<vmem>>, vector<128x32xf32>
    %cst_69 = arith.constant dense<0.000000e+00> : vector<8x32xf32>
    %128 = tpu.matmul %126, %127, %cst_69 {dimension_numbers = #tpu.dot_dimension_numbers<[1], [0], [0], [1], [0, 0, 1, 1], [], []>} : vector<8x128xf32>, vector<128x32xf32>, vector<8x32xf32> -> vector<8x32xf32>
    %129 = arith.addf %113, %128 : vector<8x32xf32>
    %130 = arith.addf %88, %129 : vector<8x32xf32>
    %c0_70 = arith.constant 0 : index
    %c0_71 = arith.constant 0 : index
    %131 = vector.load %arg14[%c0_70, %c0_71] : memref<1x32xf32, #tpu.memory_space<vmem>>, vector<1x32xf32>
    %132 = vector.broadcast %131 : vector<1x32xf32> to vector<8x32xf32>
    %133 = arith.addf %130, %132 : vector<8x32xf32>
    %c0_72 = arith.constant 0 : index
    %c0_73 = arith.constant 0 : index
    %c0_74 = arith.constant 0 : index
    %134 = vector.load %arg15[%c0_72, %c0_73, %c0_74] : memref<1x8x32xf32, #tpu.memory_space<vmem>>, vector<1x8x32xf32>
    %135 = vector.shape_cast %134 : vector<1x8x32xf32> to vector<8x32xf32>
    %136 = vector.shape_cast %133 : vector<8x32xf32> to vector<1x8x32xf32>
    tpu.vector_store %arg15[%c0_72, %c0_73, %c0_74], %136 {strides = array<i32>} : memref<1x8x32xf32, #tpu.memory_space<vmem>>, vector<1x8x32xf32>,
    return
  }
  func.func @transform_0(%arg0: i32, %arg1: i32) -> (i32, i32, i32) {
    %c0_i32 = arith.constant 0 : i32
    %c0_i32_0 = arith.constant 0 : i32
    %c0_i32_1 = arith.constant 0 : i32
    return %arg0, %c0_i32, %c0_i32_0 : i32, i32, i32
  }
  func.func @transform_1(%arg0: i32, %arg1: i32) -> (i32, i32) {
    %c0_i32 = arith.constant 0 : i32
    %c0_i32_0 = arith.constant 0 : i32
    %c0_i32_1 = arith.constant 0 : i32
    return %c0_i32, %c0_i32_0 : i32, i32
  }
  func.func @transform_2(%arg0: i32, %arg1: i32) -> (i32, i32) {
    %c0_i32 = arith.constant 0 : i32
    %c0_i32_0 = arith.constant 0 : i32
    %c0_i32_1 = arith.constant 0 : i32
    return %c0_i32, %c0_i32_0 : i32, i32
  }
  func.func @transform_3(%arg0: i32, %arg1: i32) -> (i32, i32) {
    %c0_i32 = arith.constant 0 : i32
    %c0_i32_0 = arith.constant 0 : i32
    %c0_i32_1 = arith.constant 0 : i32
    return %c0_i32, %c0_i32_0 : i32, i32
  }
  func.func @transform_4(%arg0: i32, %arg1: i32) -> (i32, i32) {
    %c0_i32 = arith.constant 0 : i32
    %c0_i32_0 = arith.constant 0 : i32
    %c0_i32_1 = arith.constant 0 : i32
    return %c0_i32, %c0_i32_0 : i32, i32
  }
  func.func @transform_5(%arg0: i32, %arg1: i32) -> (i32, i32) {
    %c0_i32 = arith.constant 0 : i32
    %c0_i32_0 = arith.constant 0 : i32
    %c0_i32_1 = arith.constant 0 : i32
    return %c0_i32, %c0_i32_0 : i32, i32
  }
  func.func @transform_6(%arg0: i32, %arg1: i32) -> (i32, i32) {
    %c0_i32 = arith.constant 0 : i32
    %c0_i32_0 = arith.constant 0 : i32
    %c0_i32_1 = arith.constant 0 : i32
    return %c0_i32, %c0_i32_0 : i32, i32
  }
  func.func @transform_7(%arg0: i32, %arg1: i32) -> (i32, i32) {
    %c0_i32 = arith.constant 0 : i32
    %c0_i32_0 = arith.constant 0 : i32
    %c0_i32_1 = arith.constant 0 : i32
    return %c0_i32, %c0_i32_0 : i32, i32
  }
  func.func @transform_8(%arg0: i32, %arg1: i32) -> (i32, i32) {
    %c0_i32 = arith.constant 0 : i32
    %c0_i32_0 = arith.constant 0 : i32
    %c0_i32_1 = arith.constant 0 : i32
    return %c0_i32, %c0_i32_0 : i32, i32
  }
  func.func @transform_9(%arg0: i32, %arg1: i32) -> (i32, i32) {
    %c0_i32 = arith.constant 0 : i32
    %c0_i32_0 = arith.constant 0 : i32
    %c0_i32_1 = arith.constant 0 : i32
    return %c0_i32, %c0_i32_0 : i32, i32
  }
  func.func @transform_10(%arg0: i32, %arg1: i32) -> (i32, i32) {
    %c0_i32 = arith.constant 0 : i32
    %c0_i32_0 = arith.constant 0 : i32
    %c0_i32_1 = arith.constant 0 : i32
    return %c0_i32, %c0_i32_0 : i32, i32
  }
  func.func @transform_11(%arg0: i32, %arg1: i32) -> (i32, i32) {
    %c0_i32 = arith.constant 0 : i32
    %c0_i32_0 = arith.constant 0 : i32
    %c0_i32_1 = arith.constant 0 : i32
    return %c0_i32, %c0_i32_0 : i32, i32
  }
  func.func @transform_12(%arg0: i32, %arg1: i32) -> (i32, i32) {
    %c0_i32 = arith.constant 0 : i32
    %c0_i32_0 = arith.constant 0 : i32
    %c0_i32_1 = arith.constant 0 : i32
    return %c0_i32, %c0_i32_0 : i32, i32
  }
  func.func @transform_13(%arg0: i32, %arg1: i32) -> (i32, i32, i32) {
    %c0_i32 = arith.constant 0 : i32
    %c0_i32_0 = arith.constant 0 : i32
    return %arg0, %arg1, %c0_i32 : i32, i32, i32
  }
}

</mosaic_0001>

<llo_original>
// kernel: tpu_custom_call.1
$region0: #{tpu_custom_call.1}
  #allocation0 [shape = 'u32[]', space=smem, size = 0x4, offset = 0x4, fixed_abs, tag = 'smem constant byte address 0x4 - core index']
  #allocation1 [shape = 'u32[144,128]{1,0:T(1,128)}', space=vmem, size = 0x12000, scoped, tag = 'internal scratch']
  #allocation2 [shape = 'f32[8,32]{1,0:T(8,128)}', space=vmem, size = 0x1000, scoped, tag = 'scratch operand']
  #allocation3 [shape = 'f32[32,8]{1,0:T(8,128)}', space=vmem, size = 0x4000, scoped, tag = 'scratch operand']
  #allocation4 [shape = 'f32[8,32]{1,0:T(8,128)}', space=vmem, size = 0x1000, scoped, tag = 'scratch operand']
  %s0 = inlined_call_operand.vmem [shape: f32[2,8,32], index: 0, kind: input, shape index: {}]
  %s1 = inlined_call_operand.vmem [shape: f32[1,32], index: 1, kind: input, shape index: {}]
  %s2 = inlined_call_operand.vmem [shape: f32[1,32], index: 2, kind: input, shape index: {}]
  %s3 = inlined_call_operand.vmem [shape: f32[32,96], index: 3, kind: input, shape index: {}]
  %s4 = inlined_call_operand.vmem [shape: f32[1,96], index: 4, kind: input, shape index: {}]
  %s5 = inlined_call_operand.vmem [shape: f32[32,32], index: 5, kind: input, shape index: {}]
  %s6 = inlined_call_operand.vmem [shape: f32[1,32], index: 6, kind: input, shape index: {}]
  %s7 = inlined_call_operand.vmem [shape: f32[1,32], index: 7, kind: input, shape index: {}]
  %s8 = inlined_call_operand.vmem [shape: f32[1,32], index: 8, kind: input, shape index: {}]
  %s9 = inlined_call_operand.vmem [shape: f32[32,128], index: 9, kind: input, shape index: {}]
  %s10 = inlined_call_operand.vmem [shape: f32[1,128], index: 10, kind: input, shape index: {}]
  %s11 = inlined_call_operand.vmem [shape: f32[128,32], index: 11, kind: input, shape index: {}]
  %s12 = inlined_call_operand.vmem [shape: f32[1,32], index: 12, kind: input, shape index: {}]
  %s13 = inlined_call_operand.hbm [shape: f32[2,8,32], index: 13, kind: output, shape index: {}]
  %s14 = sld [smem:[#allocation0]]
  $region89: #{tpu_custom_call.1} parent=0
    _
  %s16 = ssub.s32 1, %s14
  %s17 = scalar_select 0, %s16, %s14
  $region1: #{tpu_custom_call.1} parent=0
    #allocation5 [shape = 'u8[8192]{0}', space=vmem, size = 0x2000, scoped, tag = 'output window, operand 0']
    #allocation6 [shape = 's32[2]{0}', space=sflag, size = 0x8, scoped, tag = 'scoped memory for tpu_custom_call.1']
    %18 = vsyncpa [#allocation6], 0
    %s19 = scalar_lea.sflag [#allocation6], 1
    %20 = vsyncpa %s19, 0
    loop: start=0, step=1, limit=4
    $region2: #{tpu_custom_call.1} parent=1 // loop_pre_header
      _
    $region3: #{tpu_custom_call.1} parent=1 // loop_header
      %s22 = sphi 0, %s26
      %p23 = scmp.ge.s32.totalorder %s22, 4
      %s29 = sphi 0, %s41
      %s30 = sphi 0, %s37
      %s31 = sphi 0, %s29
      %s32 = sphi 0, %s30
      %s33 = sphi 0, %s31
      %s34 = sphi 0, %s32
      %s44 = sphi 0, %s46
      %s47 = sphi 0, %s44
      %s48 = sphi 0, %s47
      %s64 = sphi 0, %s48
      %s68 = sphi 0, %s68
      %s70 = sphi 0, %s68
      %s71 = sphi 0, %s70
      %s85 = sphi 0, %s71
      %s89 = sphi 0, %s89
      %s91 = sphi 0, %s89
      %s92 = sphi 0, %s91
      %s106 = sphi 0, %s92
      %s110 = sphi 0, %s110
      %s112 = sphi 0, %s110
      %s113 = sphi 0, %s112
      %s127 = sphi 0, %s113
      %s131 = sphi 0, %s131
      %s133 = sphi 0, %s131
      %s134 = sphi 0, %s133
      %s148 = sphi 0, %s134
      %s152 = sphi 0, %s152
      %s154 = sphi 0, %s152
      %s155 = sphi 0, %s154
      %s169 = sphi 0, %s155
      %s173 = sphi 0, %s173
      %s175 = sphi 0, %s173
      %s176 = sphi 0, %s175
      %s190 = sphi 0, %s176
      %s194 = sphi 0, %s194
      %s196 = sphi 0, %s194
      %s197 = sphi 0, %s196
      %s211 = sphi 0, %s197
      %s215 = sphi 0, %s215
      %s217 = sphi 0, %s215
      %s218 = sphi 0, %s217
      %s232 = sphi 0, %s218
      %s236 = sphi 0, %s236
      %s238 = sphi 0, %s236
      %s239 = sphi 0, %s238
      %s253 = sphi 0, %s239
      %s257 = sphi 0, %s257
      %s259 = sphi 0, %s257
      %s260 = sphi 0, %s259
      %s274 = sphi 0, %s260
      %s278 = sphi 0, %s278
      %s280 = sphi 0, %s278
      %s281 = sphi 0, %s280
      %s295 = sphi 0, %s281
      %s299 = sphi 0, %s299
      %s301 = sphi 0, %s299
      %s302 = sphi 0, %s301
      %s316 = sphi 0, %s302
      %s324 = sphi 0, %s326
      %s327 = sphi 0, %s324
      %s328 = sphi 0, %s327
      %s344 = sphi 0, %s328
    $region4: #{tpu_custom_call.1} parent=1 // loop_header_branch
      %25 = sbr.rel (%p23) target = $region8
    $region5: #{tpu_custom_call.1} parent=1 // loop_body
      %s27 = ssub.s32 %s22, 1
      %s28 = ssub.s32 %s22, 2
      %s35 = sadd.s32 1, %s30
      %p36 = scmp.ge.s32.totalorder %s35, 1
      %s37 = scalar_select %p36, 0, %s35
      %s38 = sadd.s32 1, %s29
      %s39 = scalar_select %p36, %s38, %s29
      %p40 = scmp.ge.s32.totalorder %s39, 2
      %s41 = scalar_select %p40, 0, %s39
      %s42 = ssub.s32 %s29, %s41
      %p43 = scmp.eq.s32.totalorder %s42, 0
      %s45 = sadd.s32 %s44, 1
      %s46 = scalar_select %p43, %s44, %s45
      %p49 = pneg %p43
      %p50 = scmp.eq.s32.totalorder %s22, 1
      %p51 = por %p49, %p50
      %p52 = scmp.ne.s32.totalorder %s44, %s47
      %p53 = scmp.eq.s32.totalorder %s22, 0
      %p54 = por %p52, %p53
      %p55 = scmp.ne.s32.totalorder %s44, %s47
      %p56 = scmp.eq.s32.totalorder %s27, 1
      %p57 = por %p55, %p56
      %p58 = scmp.ne.s32.totalorder %s47, %s48
      %p59 = scmp.eq.s32.totalorder %s27, 0
      %p60 = por %p58, %p59
      %p61 = scmp.ne.s32.totalorder %s47, %s48
      %p62 = scmp.eq.s32.totalorder %s28, 1
      %p63 = por %p61, %p62
      %p65 = scmp.ne.s32.totalorder %s48, %s64
      %p66 = scmp.eq.s32.totalorder %s28, 0
      %p67 = por %p65, %p66
      %s69 = sadd.s32 %s68, 1
      %p72 = scmp.eq.s32.totalorder %s22, 1
      %p73 = scmp.ne.s32.totalorder %s68, %s70
      %p74 = scmp.eq.s32.totalorder %s22, 0
      %p75 = por %p73, %p74
      %p76 = scmp.ne.s32.totalorder %s68, %s70
      %p77 = scmp.eq.s32.totalorder %s27, 1
      %p78 = por %p76, %p77
      %p79 = scmp.ne.s32.totalorder %s70, %s71
      %p80 = scmp.eq.s32.totalorder %s27, 0
      %p81 = por %p79, %p80
      %p82 = scmp.ne.s32.totalorder %s70, %s71
      %p83 = scmp.eq.s32.totalorder %s28, 1
      %p84 = por %p82, %p83
      %p86 = scmp.ne.s32.totalorder %s71, %s85
      %p87 = scmp.eq.s32.totalorder %s28, 0
      %p88 = por %p86, %p87
      %s90 = sadd.s32 %s89, 1
      %p93 = scmp.eq.s32.totalorder %s22, 1
      %p94 = scmp.ne.s32.totalorder %s89, %s91
      %p95 = scmp.eq.s32.totalorder %s22, 0
      %p96 = por %p94, %p95
      %p97 = scmp.ne.s32.totalorder %s89, %s91
      %p98 = scmp.eq.s32.totalorder %s27, 1
      %p99 = por %p97, %p98
      %p100 = scmp.ne.s32.totalorder %s91, %s92
      %p101 = scmp.eq.s32.totalorder %s27, 0
      %p102 = por %p100, %p101
      %p103 = scmp.ne.s32.totalorder %s91, %s92
      %p104 = scmp.eq.s32.totalorder %s28, 1
      %p105 = por %p103, %p104
      %p107 = scmp.ne.s32.totalorder %s92, %s106
      %p108 = scmp.eq.s32.totalorder %s28, 0
      %p109 = por %p107, %p108
      %s111 = sadd.s32 %s110, 1
      %p114 = scmp.eq.s32.totalorder %s22, 1
      %p115 = scmp.ne.s32.totalorder %s110, %s112
      %p116 = scmp.eq.s32.totalorder %s22, 0
      %p117 = por %p115, %p116
      %p118 = scmp.ne.s32.totalorder %s110, %s112
      %p119 = scmp.eq.s32.totalorder %s27, 1
      %p120 = por %p118, %p119
      %p121 = scmp.ne.s32.totalorder %s112, %s113
      %p122 = scmp.eq.s32.totalorder %s27, 0
      %p123 = por %p121, %p122
      %p124 = scmp.ne.s32.totalorder %s112, %s113
      %p125 = scmp.eq.s32.totalorder %s28, 1
      %p126 = por %p124, %p125
      %p128 = scmp.ne.s32.totalorder %s113, %s127
      %p129 = scmp.eq.s32.totalorder %s28, 0
      %p130 = por %p128, %p129
      %s132 = sadd.s32 %s131, 1
      %p135 = scmp.eq.s32.totalorder %s22, 1
      %p136 = scmp.ne.s32.totalorder %s131, %s133
      %p137 = scmp.eq.s32.totalorder %s22, 0
      %p138 = por %p136, %p137
      %p139 = scmp.ne.s32.totalorder %s131, %s133
      %p140 = scmp.eq.s32.totalorder %s27, 1
      %p141 = por %p139, %p140
      %p142 = scmp.ne.s32.totalorder %s133, %s134
      %p143 = scmp.eq.s32.totalorder %s27, 0
      %p144 = por %p142, %p143
      %p145 = scmp.ne.s32.totalorder %s133, %s134
      %p146 = scmp.eq.s32.totalorder %s28, 1
      %p147 = por %p145, %p146
      %p149 = scmp.ne.s32.totalorder %s134, %s148
      %p150 = scmp.eq.s32.totalorder %s28, 0
      %p151 = por %p149, %p150
      %s153 = sadd.s32 %s152, 1
      %p156 = scmp.eq.s32.totalorder %s22, 1
      %p157 = scmp.ne.s32.totalorder %s152, %s154
      %p158 = scmp.eq.s32.totalorder %s22, 0
      %p159 = por %p157, %p158
      %p160 = scmp.ne.s32.totalorder %s152, %s154
      %p161 = scmp.eq.s32.totalorder %s27, 1
      %p162 = por %p160, %p161
      %p163 = scmp.ne.s32.totalorder %s154, %s155
      %p164 = scmp.eq.s32.totalorder %s27, 0
      %p165 = por %p163, %p164
      %p166 = scmp.ne.s32.totalorder %s154, %s155
      %p167 = scmp.eq.s32.totalorder %s28, 1
      %p168 = por %p166, %p167
      %p170 = scmp.ne.s32.totalorder %s155, %s169
      %p171 = scmp.eq.s32.totalorder %s28, 0
      %p172 = por %p170, %p171
      %s174 = sadd.s32 %s173, 1
      %p177 = scmp.eq.s32.totalorder %s22, 1
      %p178 = scmp.ne.s32.totalorder %s173, %s175
      %p179 = scmp.eq.s32.totalorder %s22, 0
      %p180 = por %p178, %p179
      %p181 = scmp.ne.s32.totalorder %s173, %s175
      %p182 = scmp.eq.s32.totalorder %s27, 1
      %p183 = por %p181, %p182
      %p184 = scmp.ne.s32.totalorder %s175, %s176
      %p185 = scmp.eq.s32.totalorder %s27, 0
      %p186 = por %p184, %p185
      %p187 = scmp.ne.s32.totalorder %s175, %s176
      %p188 = scmp.eq.s32.totalorder %s28, 1
      %p189 = por %p187, %p188
      %p191 = scmp.ne.s32.totalorder %s176, %s190
      %p192 = scmp.eq.s32.totalorder %s28, 0
      %p193 = por %p191, %p192
      %s195 = sadd.s32 %s194, 1
      %p198 = scmp.eq.s32.totalorder %s22, 1
      %p199 = scmp.ne.s32.totalorder %s194, %s196
      %p200 = scmp.eq.s32.totalorder %s22, 0
      %p201 = por %p199, %p200
      %p202 = scmp.ne.s32.totalorder %s194, %s196
      %p203 = scmp.eq.s32.totalorder %s27, 1
      %p204 = por %p202, %p203
      %p205 = scmp.ne.s32.totalorder %s196, %s197
      %p206 = scmp.eq.s32.totalorder %s27, 0
      %p207 = por %p205, %p206
      %p208 = scmp.ne.s32.totalorder %s196, %s197
      %p209 = scmp.eq.s32.totalorder %s28, 1
      %p210 = por %p208, %p209
      %p212 = scmp.ne.s32.totalorder %s197, %s211
      %p213 = scmp.eq.s32.totalorder %s28, 0
      %p214 = por %p212, %p213
      %s216 = sadd.s32 %s215, 1
      %p219 = scmp.eq.s32.totalorder %s22, 1
      %p220 = scmp.ne.s32.totalorder %s215, %s217
      %p221 = scmp.eq.s32.totalorder %s22, 0
      %p222 = por %p220, %p221
      %p223 = scmp.ne.s32.totalorder %s215, %s217
      %p224 = scmp.eq.s32.totalorder %s27, 1
      %p225 = por %p223, %p224
      %p226 = scmp.ne.s32.totalorder %s217, %s218
      %p227 = scmp.eq.s32.totalorder %s27, 0
      %p228 = por %p226, %p227
      %p229 = scmp.ne.s32.totalorder %s217, %s218
      %p230 = scmp.eq.s32.totalorder %s28, 1
      %p231 = por %p229, %p230
      %p233 = scmp.ne.s32.totalorder %s218, %s232
      %p234 = scmp.eq.s32.totalorder %s28, 0
      %p235 = por %p233, %p234
      %s237 = sadd.s32 %s236, 1
      %p240 = scmp.eq.s32.totalorder %s22, 1
      %p241 = scmp.ne.s32.totalorder %s236, %s238
      %p242 = scmp.eq.s32.totalorder %s22, 0
      %p243 = por %p241, %p242
      %p244 = scmp.ne.s32.totalorder %s236, %s238
      %p245 = scmp.eq.s32.totalorder %s27, 1
      %p246 = por %p244, %p245
      %p247 = scmp.ne.s32.totalorder %s238, %s239
      %p248 = scmp.eq.s32.totalorder %s27, 0
      %p249 = por %p247, %p248
      %p250 = scmp.ne.s32.totalorder %s238, %s239
      %p251 = scmp.eq.s32.totalorder %s28, 1
      %p252 = por %p250, %p251
      %p254 = scmp.ne.s32.totalorder %s239, %s253
      %p255 = scmp.eq.s32.totalorder %s28, 0
      %p256 = por %p254, %p255
      %s258 = sadd.s32 %s257, 1
      %p261 = scmp.eq.s32.totalorder %s22, 1
      %p262 = scmp.ne.s32.totalorder %s257, %s259
      %p263 = scmp.eq.s32.totalorder %s22, 0
      %p264 = por %p262, %p263
      %p265 = scmp.ne.s32.totalorder %s257, %s259
      %p266 = scmp.eq.s32.totalorder %s27, 1
      %p267 = por %p265, %p266
      %p268 = scmp.ne.s32.totalorder %s259, %s260
      %p269 = scmp.eq.s32.totalorder %s27, 0
      %p270 = por %p268, %p269
      %p271 = scmp.ne.s32.totalorder %s259, %s260
      %p272 = scmp.eq.s32.totalorder %s28, 1
      %p273 = por %p271, %p272
      %p275 = scmp.ne.s32.totalorder %s260, %s274
      %p276 = scmp.eq.s32.totalorder %s28, 0
      %p277 = por %p275, %p276
      %s279 = sadd.s32 %s278, 1
      %p282 = scmp.eq.s32.totalorder %s22, 1
      %p283 = scmp.ne.s32.totalorder %s278, %s280
      %p284 = scmp.eq.s32.totalorder %s22, 0
      %p285 = por %p283, %p284
      %p286 = scmp.ne.s32.totalorder %s278, %s280
      %p287 = scmp.eq.s32.totalorder %s27, 1
      %p288 = por %p286, %p287
      %p289 = scmp.ne.s32.totalorder %s280, %s281
      %p290 = scmp.eq.s32.totalorder %s27, 0
      %p291 = por %p289, %p290
      %p292 = scmp.ne.s32.totalorder %s280, %s281
      %p293 = scmp.eq.s32.totalorder %s28, 1
      %p294 = por %p292, %p293
      %p296 = scmp.ne.s32.totalorder %s281, %s295
      %p297 = scmp.eq.s32.totalorder %s28, 0
      %p298 = por %p296, %p297
      %s300 = sadd.s32 %s299, 1
      %p303 = scmp.eq.s32.totalorder %s22, 1
      %p304 = scmp.ne.s32.totalorder %s299, %s301
      %p305 = scmp.eq.s32.totalorder %s22, 0
      %p306 = por %p304, %p305
      %p307 = scmp.ne.s32.totalorder %s299, %s301
      %p308 = scmp.eq.s32.totalorder %s27, 1
      %p309 = por %p307, %p308
      %p310 = scmp.ne.s32.totalorder %s301, %s302
      %p311 = scmp.eq.s32.totalorder %s27, 0
      %p312 = por %p310, %p311
      %p313 = scmp.ne.s32.totalorder %s301, %s302
      %p314 = scmp.eq.s32.totalorder %s28, 1
      %p315 = por %p313, %p314
      %p317 = scmp.ne.s32.totalorder %s302, %s316
      %p318 = scmp.eq.s32.totalorder %s28, 0
      %p319 = por %p317, %p318
      %s320 = ssub.s32 %s29, %s41
      %s321 = ssub.s32 %s30, %s37
      %s322 = sor.u32 %s320, %s321
      %p323 = scmp.eq.s32.totalorder %s322, 0
      %s325 = sadd.s32 %s324, 1
      %s326 = scalar_select %p323, %s324, %s325
      %p329 = pneg %p323
      %p330 = scmp.eq.s32.totalorder %s22, 1
      %p331 = por %p329, %p330
      %p332 = scmp.ne.s32.totalorder %s324, %s327
      %p333 = scmp.eq.s32.totalorder %s22, 0
      %p334 = por %p332, %p333
      %p335 = scmp.ne.s32.totalorder %s324, %s327
      %p336 = scmp.eq.s32.totalorder %s27, 1
      %p337 = por %p335, %p336
      %p338 = scmp.ne.s32.totalorder %s327, %s328
      %p339 = scmp.eq.s32.totalorder %s27, 0
      %p340 = por %p338, %p339
      %p341 = scmp.ne.s32.totalorder %s327, %s328
      %p342 = scmp.eq.s32.totalorder %s28, 1
      %p343 = por %p341, %p342
      %p345 = scmp.ne.s32.totalorder %s328, %s344
      %p346 = scmp.eq.s32.totalorder %s28, 0
      %p347 = por %p345, %p346
      %p348 = scmp.le.s32.totalorder 1, %s22
      %p349 = scmp.lt.s32.totalorder %s22, 3
      %p350 = pnand %p348, %p349
      %p351 = pneg %p350
      // Predicated region
      $region9: #{tpu_custom_call.1} parent=5 // pred_check
        _
      $region10: #{tpu_custom_call.1} parent=5 // pred_check_branch
        %353 = sbr.rel (%p350) target = $region12
      $region11: #{tpu_custom_call.1} parent=5 // pred_region
        %s354 = ssub.s32 %s22, 1
        // Predicated region
        $region13: #{tpu_custom_call.1} parent=11 // pred_check
          %p355 = pneg %p81
        $region14: #{tpu_custom_call.1} parent=11 // pred_check_branch
          %357 = sbr.rel (%p355) target = $region16
        $region15: #{tpu_custom_call.1} parent=11 // pred_region
          _
        $region16: #{tpu_custom_call.1} parent=11 // pred_fallthru
          _
        // Predicated region
        $region17: #{tpu_custom_call.1} parent=11 // pred_check
          %p358 = pneg %p102
        $region18: #{tpu_custom_call.1} parent=11 // pred_check_branch
          %360 = sbr.rel (%p358) target = $region20
        $region19: #{tpu_custom_call.1} parent=11 // pred_region
          _
        $region20: #{tpu_custom_call.1} parent=11 // pred_fallthru
          _
        // Predicated region
        $region21: #{tpu_custom_call.1} parent=11 // pred_check
          %p361 = pneg %p123
        $region22: #{tpu_custom_call.1} parent=11 // pred_check_branch
          %363 = sbr.rel (%p361) target = $region24
        $region23: #{tpu_custom_call.1} parent=11 // pred_region
          _
        $region24: #{tpu_custom_call.1} parent=11 // pred_fallthru
          _
        // Predicated region
        $region25: #{tpu_custom_call.1} parent=11 // pred_check
          %p364 = pneg %p144
        $region26: #{tpu_custom_call.1} parent=11 // pred_check_branch
          %366 = sbr.rel (%p364) target = $region28
        $region27: #{tpu_custom_call.1} parent=11 // pred_region
          _
        $region28: #{tpu_custom_call.1} parent=11 // pred_fallthru
          _
        // Predicated region
        $region29: #{tpu_custom_call.1} parent=11 // pred_check
          %p367 = pneg %p165
        $region30: #{tpu_custom_call.1} parent=11 // pred_check_branch
          %369 = sbr.rel (%p367) target = $region32
        $region31: #{tpu_custom_call.1} parent=11 // pred_region
          _
        $region32: #{tpu_custom_call.1} parent=11 // pred_fallthru
          _
        // Predicated region
        $region33: #{tpu_custom_call.1} parent=11 // pred_check
          %p370 = pneg %p186
        $region34: #{tpu_custom_call.1} parent=11 // pred_check_branch
          %372 = sbr.rel (%p370) target = $region36
        $region35: #{tpu_custom_call.1} parent=11 // pred_region
          _
        $region36: #{tpu_custom_call.1} parent=11 // pred_fallthru
          _
        // Predicated region
        $region37: #{tpu_custom_call.1} parent=11 // pred_check
          %p373 = pneg %p207
        $region38: #{tpu_custom_call.1} parent=11 // pred_check_branch
          %375 = sbr.rel (%p373) target = $region40
        $region39: #{tpu_custom_call.1} parent=11 // pred_region
          _
        $region40: #{tpu_custom_call.1} parent=11 // pred_fallthru
          _
        // Predicated region
        $region41: #{tpu_custom_call.1} parent=11 // pred_check
          %p376 = pneg %p228
        $region42: #{tpu_custom_call.1} parent=11 // pred_check_branch
          %378 = sbr.rel (%p376) target = $region44
        $region43: #{tpu_custom_call.1} parent=11 // pred_region
          _
        $region44: #{tpu_custom_call.1} parent=11 // pred_fallthru
          _
        // Predicated region
        $region45: #{tpu_custom_call.1} parent=11 // pred_check
          %p379 = pneg %p249
        $region46: #{tpu_custom_call.1} parent=11 // pred_check_branch
          %381 = sbr.rel (%p379) target = $region48
        $region47: #{tpu_custom_call.1} parent=11 // pred_region
          _
        $region48: #{tpu_custom_call.1} parent=11 // pred_fallthru
          _
        // Predicated region
        $region49: #{tpu_custom_call.1} parent=11 // pred_check
          %p382 = pneg %p270
        $region50: #{tpu_custom_call.1} parent=11 // pred_check_branch
          %384 = sbr.rel (%p382) target = $region52
        $region51: #{tpu_custom_call.1} parent=11 // pred_region
          _
        $region52: #{tpu_custom_call.1} parent=11 // pred_fallthru
          _
        // Predicated region
        $region53: #{tpu_custom_call.1} parent=11 // pred_check
          %p385 = pneg %p291
        $region54: #{tpu_custom_call.1} parent=11 // pred_check_branch
          %387 = sbr.rel (%p385) target = $region56
        $region55: #{tpu_custom_call.1} parent=11 // pred_region
          _
        $region56: #{tpu_custom_call.1} parent=11 // pred_fallthru
          _
        // Predicated region
        $region57: #{tpu_custom_call.1} parent=11 // pred_check
          %p388 = pneg %p312
        $region58: #{tpu_custom_call.1} parent=11 // pred_check_branch
          %390 = sbr.rel (%p388) target = $region60
        $region59: #{tpu_custom_call.1} parent=11 // pred_region
          _
        $region60: #{tpu_custom_call.1} parent=11 // pred_fallthru
          _
      $region12: #{tpu_custom_call.1} parent=5 // pred_fallthru
        _
      %p391 = scmp.lt.s32.totalorder %s22, 2
      // Predicated region
      $region61: #{tpu_custom_call.1} parent=5 // pred_check
        %p392 = pneg %p391
      $region62: #{tpu_custom_call.1} parent=5 // pred_check_branch
        %394 = sbr.rel (%p392) target = $region64
      $region63: #{tpu_custom_call.1} parent=5 // pred_region
        // Predicated region
        $region65: #{tpu_custom_call.1} parent=63 // pred_check
          %p395 = pneg %p54
        $region66: #{tpu_custom_call.1} parent=63 // pred_check_branch
          %397 = sbr.rel (%p395) target = $region68
        $region67: #{tpu_custom_call.1} parent=63 // pred_region
          %p398 = scmp.lt.s32.totalorder %s29, 1
          %s399 = scalar_select %p398, %s29, 1
          %s400 = smul.addr %s399, 8
          %s401 = scalar_lea.vmem %s0, %s400
        $region68: #{tpu_custom_call.1} parent=63 // pred_fallthru
          _
      $region64: #{tpu_custom_call.1} parent=5 // pred_fallthru
        _
      %p402 = scmp.le.s32.totalorder 1, %s22
      %p403 = scmp.lt.s32.totalorder %s22, 3
      %p404 = pnand %p402, %p403
      %p405 = pneg %p404
      // Predicated region
      $region69: #{tpu_custom_call.1} parent=5 // pred_check
        _
      $region70: #{tpu_custom_call.1} parent=5 // pred_check_branch
        %407 = sbr.rel (%p404) target = $region72
      $region71: #{tpu_custom_call.1} parent=5 // pred_region
        %s408 = ssub.s32 %s22, 1
        %p409 = scmp.lt.s32.totalorder %s31, 1
        %s410 = scalar_select %p409, %s31, 1
        %s411 = smul.addr %s410, 8
        %s412 = scalar_lea.vmem %s0, %s411
        %p413 = pneg %p60
        %p414 = pneg %p57
        %p415 = pneg %p81
        %p416 = pneg %p78
        %p417 = pneg %p102
        %p418 = pneg %p99
        %p419 = pneg %p123
        %p420 = pneg %p120
        %p421 = pneg %p144
        %p422 = pneg %p141
        %p423 = pneg %p165
        %p424 = pneg %p162
        %p425 = pneg %p186
        %p426 = pneg %p183
        %p427 = pneg %p207
        %p428 = pneg %p204
        %p429 = pneg %p228
        %p430 = pneg %p225
        %p431 = pneg %p249
        %p432 = pneg %p246
        %p433 = pneg %p270
        %p434 = pneg %p267
        %p435 = pneg %p291
        %p436 = pneg %p288
        %p437 = pneg %p312
        %p438 = pneg %p309
        %p439 = pneg %p340
        %p440 = pneg %p337
        %s441 = sand.u32 %s327, 1
        %s442 = scalar_lea.sflag [#allocation6], %s441
        %s443 = sand.u32 %s327, 1
        %s444 = smul.addr %s443, 8
        %s445 = scalar_lea.vmem [#allocation5], %s444
        %p446 = scmp.lt.s32.totalorder %s31, 1
        %s447 = scalar_select %p446, %s31, 1
        %s448 = smul.addr %s447, 8
        %s449 = scalar_lea.vmem %s0, %s448
        %p450 = scmp.eq.s32.totalorder %s32, 0
        // Predicated region
        $region73: #{tpu_custom_call.1} parent=71 // pred_check
          %p451 = pneg %p450
        $region74: #{tpu_custom_call.1} parent=71 // pred_check_branch
          %453 = sbr.rel (%p451) target = $region76
        $region75: #{tpu_custom_call.1} parent=71 // pred_region
          %v454 = vld [vmem:[%s449] sm:$0xff]
          %v455 = vld [vmem:[%s1] sm:$0x1]
          %v456 = vld [vmem:[%s2] sm:$0x1]
          %vm457 = vcmask 261120
          %v458 = vsel %vm457, %v454, 0.0
          %459 = vadd.xlane.f32.xlu0 %v458
          %v460 = vpop.xlane.xlu0 %459
          %v461 = vrcp.pop 32.0
          %v462 = vmul.f32 %v460, %v461
          %v463 = vsub.f32 %v454, %v462
          %v464 = vmul.f32 %v463, %v463
          %v465 = vsel %vm457, %v464, 0.0
          %466 = vadd.xlane.f32.xlu0 %v465
          %v467 = vpop.xlane.xlu0 %466
          %v468 = vmul.f32 %v467, %v461
          %v469 = vadd.f32 %v468, 1e-05
          %v470 = vrsqrt.pop %v469
          %v471 = vmul.f32 %v463, %v470
          %v473 = vlaneseq
          %v474 = vshrl.u32 %v473, 7
          %v475 = vsub.s32 0, %v474
          %v476 = vrot.slane %v455, %v475
          %v478 = vmul.f32 %v471, %v476
          %v480 = vlaneseq
          %v481 = vshrl.u32 %v480, 7
          %v482 = vsub.s32 0, %v481
          %v483 = vrot.slane %v456, %v482
          %v485 = vadd.f32 %v478, %v483
          %v486 = vld [vmem:[%s3] sm:$0xff]
          %v487 = vld [vmem:[%s3 + $0x8] sm:$0xff]
          %v488 = vld [vmem:[%s3 + $0x10] sm:$0xff]
          %v489 = vld [vmem:[%s3 + $0x18] sm:$0xff]
          %v490 = vld [vmem:[%s4] sm:$0x1]
          %v492 = vlaneseq
          %v493 = vshrl.u32 %v492, 7
          %v494 = vsub.s32 0, %v493
          %v495 = vrot.slane %v490, %v494
          %v498 = vsel %vm457, %v485, 0
          %500 = vmatprep.subr.mxu0 0.0
          %501 = vmatpush1.msra.mxu0 %v486
          %502 = vmatprep.subr.mxu0 0.0
          %503 = vmatpush1.msra.mxu0 %v487
          %504 = vmatprep.subr.mxu0 0.0
          %505 = vmatpush1.msra.mxu0 %v488
          %506 = vmatprep.subr.mxu0 0.0
          %507 = vmatpush1.msra.mxu0 %v489
          %508 = vmatprep.subr.mxu0 0.0
          %509 = vmatpush1.msra.mxu0 0.0
          %510 = vmatprep.subr.mxu0 0.0
          %511 = vmatpush1.msra.mxu0 0.0
          %512 = vmatprep.subr.mxu0 0.0
          %513 = vmatpush1.msra.mxu0 0.0
          %514 = vmatprep.subr.mxu0 0.0
          %515 = vmatpush1.msra.mxu0 0.0
          %516 = vmatprep.subr.mxu0 0.0
          %517 = vmatpush1.msra.mxu0 0.0
          %518 = vmatprep.subr.mxu0 0.0
          %519 = vmatpush1.msra.mxu0 0.0
          %520 = vmatprep.subr.mxu0 0.0
          %521 = vmatpush1.msra.mxu0 0.0
          %522 = vmatprep.subr.mxu0 0.0
          %523 = vmatpush1.msra.mxu0 0.0
          %524 = vmatprep.subr.mxu0 0.0
          %525 = vmatpush1.msra.mxu0 0.0
          %526 = vmatprep.subr.mxu0 0.0
          %527 = vmatpush1.msra.mxu0 0.0
          %528 = vmatprep.subr.mxu0 0.0
          %529 = vmatpush1.msra.mxu0 0.0
          %530 = vmatprep.subr.mxu0 0.0
          %531 = vmatpush1.msra.mxu0 0.0
          %532 = vmatprep.subr.mxu0 0.0
          %533 = vmatpush1.msra.mxu0 0.0
          %534 = vmatprep.subr.mxu0 0.0
          %535 = vmatpush1.msra.mxu0 0.0
          %536 = vmatprep.subr.mxu0 0.0
          %537 = vmatpush1.msra.mxu0 0.0
          %538 = vmatprep.subr.mxu0 0.0
          %539 = vmatpush1.msra.mxu0 0.0
          %540 = vmatprep.subr.mxu0 0.0
          %541 = vmatpush1.msra.mxu0 0.0
          %542 = vmatprep.subr.mxu0 0.0
          %543 = vmatpush1.msra.mxu0 0.0
          %544 = vmatprep.subr.mxu0 0.0
          %545 = vmatpush1.msra.mxu0 0.0
          %546 = vmatprep.subr.mxu0 0.0
          %547 = vmatpush1.msra.mxu0 0.0
          %548 = vmatprep.subr.mxu0 0.0
          %549 = vmatpush1.msra.mxu0 0.0
          %550 = vmatprep.subr.mxu0 0.0
          %551 = vmatpush1.msra.mxu0 0.0
          %552 = vmatprep.subr.mxu0 0.0
          %553 = vmatpush1.msra.mxu0 0.0
          %554 = vmatprep.subr.mxu0 0.0
          %555 = vmatpush1.msra.mxu0 0.0
          %556 = vmatprep.subr.mxu0 0.0
          %557 = vmatpush1.msra.mxu0 0.0
          %558 = vmatprep.subr.mxu0 0.0
          %559 = vmatpush1.msra.mxu0 0.0
          %560 = vmatprep.subr.mxu0 0.0
          %561 = vmatpush1.msra.mxu0 0.0
          %562 = vmatprep.subr.mxu0 0.0
          %563 = vmatpush1.msra.mxu0 0.0
          %564 = vmatprep.mubr.f32.mxu0 0.0
          %565 = vmatmul.mubr.f32.gmra.mrb[0].mxu0 %v498
          %v566 = vpop.f32.mrb[0].mxu0
          %v567 = vadd.f32 %v495, %v566
          %v568 = vpop.f32.mrb[0].mxu0
          %569 = vdwg.mxu0
          %570 = vst.msk [vmem:[#allocation2] sm:$0xff] %vm457, %v567
          %572 = vrot.lane.b32.xlu0 %v567, 96
          %v573 = vpop.permute.xlu0 %572
          %575 = vxpose.xlu0.b32.start [1/16] %v573, 128
          %576 = vxpose.xlu0.b32.cont [2/16] 0.0, 128
          %577 = vxpose.xlu0.b32.cont [3/16] 0.0, 128
          %578 = vxpose.xlu0.b32.cont [4/16] 0.0, 128
          %579 = vxpose.xlu0.b32.cont [5/16] 0.0, 128
          %580 = vxpose.xlu0.b32.cont [6/16] 0.0, 128
          %581 = vxpose.xlu0.b32.cont [7/16] 0.0, 128
          %582 = vxpose.xlu0.b32.cont [8/16] 0.0, 128
          %583 = vxpose.xlu0.b32.cont [9/16] 0.0, 128
          %584 = vxpose.xlu0.b32.cont [10/16] 0.0, 128
          %585 = vxpose.xlu0.b32.cont [11/16] 0.0, 128
          %586 = vxpose.xlu0.b32.cont [12/16] 0.0, 128
          %587 = vxpose.xlu0.b32.cont [13/16] 0.0, 128
          %588 = vxpose.xlu0.b32.cont [14/16] 0.0, 128
          %589 = vxpose.xlu0.b32.cont [15/16] 0.0, 128
          %590 = vxpose.xlu0.b32.end [16/16] 0.0, 128
          %v591 = vpop.trf.xlu0
          %v592 = vpop.trf.xlu0
          %v593 = vpop.trf.xlu0
          %v594 = vpop.trf.xlu0
          %v595 = vpop.trf.xlu0
          %v596 = vpop.trf.xlu0
          %v597 = vpop.trf.xlu0
          %v598 = vpop.trf.xlu0
          %v599 = vpop.trf.xlu0
          %v600 = vpop.trf.xlu0
          %v601 = vpop.trf.xlu0
          %v602 = vpop.trf.xlu0
          %v603 = vpop.trf.xlu0
          %v604 = vpop.trf.xlu0
          %v605 = vpop.trf.xlu0
          %v606 = vpop.trf.xlu0
          %vm607 = vcmask 64512
          %608 = vst.msk [vmem:[#allocation3] sm:$0xff] %vm607, %v591
          %609 = vst.msk [vmem:[#allocation3 + $0x8] sm:$0xff] %vm607, %v592
          %610 = vst.msk [vmem:[#allocation3 + $0x10] sm:$0xff] %vm607, %v593
          %611 = vst.msk [vmem:[#allocation3 + $0x18] sm:$0xff] %vm607, %v594
          %612 = vrot.lane.b32.xlu0 %v567, 64
          %v613 = vpop.permute.xlu0 %612
          %615 = vst.msk [vmem:[#allocation4] sm:$0xff] %vm457, %v613
        $region76: #{tpu_custom_call.1} parent=71 // pred_fallthru
          _
        %s616 = smul.u32 %s32, 8
        %s617 = scalar_lea.vmem %s449, %s616
        %v618 = vld [vmem:[%s617] sm:$0xff]
        %s619 = scalar_lea.vmem [#allocation2], %s616
        %v620 = vld [vmem:[%s619] sm:$0xff]
        %v621 = vld [vmem:[#allocation3] sm:$0xff]
        %v622 = vld [vmem:[#allocation4] sm:$0xff]
        %vm623 = vcmask 64512
        %v625 = vsel %vm623, %v620, 0
        %627 = vmatprep.subr.mxu0 0.0
        %628 = vmatpush1.msra.mxu0 %v621
        %629 = vmatprep.subr.mxu0 0.0
        %630 = vmatpush1.msra.mxu0 0.0
        %631 = vmatprep.subr.mxu0 0.0
        %632 = vmatpush1.msra.mxu0 0.0
        %633 = vmatprep.subr.mxu0 0.0
        %634 = vmatpush1.msra.mxu0 0.0
        %635 = vmatprep.subr.mxu0 0.0
        %636 = vmatpush1.msra.mxu0 0.0
        %637 = vmatprep.subr.mxu0 0.0
        %638 = vmatpush1.msra.mxu0 0.0
        %639 = vmatprep.subr.mxu0 0.0
        %640 = vmatpush1.msra.mxu0 0.0
        %641 = vmatprep.subr.mxu0 0.0
        %642 = vmatpush1.msra.mxu0 0.0
        %643 = vmatprep.subr.mxu0 0.0
        %644 = vmatpush1.msra.mxu0 0.0
        %645 = vmatprep.subr.mxu0 0.0
        %646 = vmatpush1.msra.mxu0 0.0
        %647 = vmatprep.subr.mxu0 0.0
        %648 = vmatpush1.msra.mxu0 0.0
        %649 = vmatprep.subr.mxu0 0.0
        %650 = vmatpush1.msra.mxu0 0.0
        %651 = vmatprep.subr.mxu0 0.0
        %652 = vmatpush1.msra.mxu0 0.0
        %653 = vmatprep.subr.mxu0 0.0
        %654 = vmatpush1.msra.mxu0 0.0
        %655 = vmatprep.subr.mxu0 0.0
        %656 = vmatpush1.msra.mxu0 0.0
        %657 = vmatprep.subr.mxu0 0.0
        %658 = vmatpush1.msra.mxu0 0.0
        %659 = vmatprep.subr.mxu0 0.0
        %660 = vmatpush1.msra.mxu0 0.0
        %661 = vmatprep.subr.mxu0 0.0
        %662 = vmatpush1.msra.mxu0 0.0
        %663 = vmatprep.subr.mxu0 0.0
        %664 = vmatpush1.msra.mxu0 0.0
        %665 = vmatprep.subr.mxu0 0.0
        %666 = vmatpush1.msra.mxu0 0.0
        %667 = vmatprep.subr.mxu0 0.0
        %668 = vmatpush1.msra.mxu0 0.0
        %669 = vmatprep.subr.mxu0 0.0
        %670 = vmatpush1.msra.mxu0 0.0
        %671 = vmatprep.subr.mxu0 0.0
        %672 = vmatpush1.msra.mxu0 0.0
        %673 = vmatprep.subr.mxu0 0.0
        %674 = vmatpush1.msra.mxu0 0.0
        %675 = vmatprep.subr.mxu0 0.0
        %676 = vmatpush1.msra.mxu0 0.0
        %677 = vmatprep.subr.mxu0 0.0
        %678 = vmatpush1.msra.mxu0 0.0
        %679 = vmatprep.subr.mxu0 0.0
        %680 = vmatpush1.msra.mxu0 0.0
        %681 = vmatprep.subr.mxu0 0.0
        %682 = vmatpush1.msra.mxu0 0.0
        %683 = vmatprep.subr.mxu0 0.0
        %684 = vmatpush1.msra.mxu0 0.0
        %685 = vmatprep.subr.mxu0 0.0
        %686 = vmatpush1.msra.mxu0 0.0
        %687 = vmatprep.subr.mxu0 0.0
        %688 = vmatpush1.msra.mxu0 0.0
        %689 = vmatprep.subr.mxu0 0.0
        %690 = vmatpush1.msra.mxu0 0.0
        %691 = vmatprep.mubr.f32.mxu0 0.0
        %692 = vmatmul.mubr.f32.gmra.mrb[0].mxu0 %v625
        %v693 = vpop.f32.mrb[0].mxu0
        %v694 = vadd.f32 0.0, %v693
        %v695 = vpop.f32.mrb[0].mxu0
        %696 = vdwg.mxu0
        %v697 = vsel %vm623, %v694, -inf
        %698 = vmax.xlane.f32.xlu0 %v697
        %v699 = vpop.xlane.xlu0 %698
        %v700 = vsub.f32 %v694, %v699
        %v701 = vmul.f32 %v700, 1.442695
        %v702 = vpow.pop %v701
        %v703 = vsel %vm623, %v702, 0.0
        %704 = vadd.xlane.f32.xlu0 %v703
        %v705 = vpop.xlane.xlu0 %704
        %v707 = vsel %vm623, %v702, 0
        %709 = vmatprep.subr.mxu0 0.0
        %710 = vmatpush1.msra.mxu0 %v622
        %711 = vmatprep.subr.mxu0 0.0
        %712 = vmatpush1.msra.mxu0 0.0
        %713 = vmatprep.subr.mxu0 0.0
        %714 = vmatpush1.msra.mxu0 0.0
        %715 = vmatprep.subr.mxu0 0.0
        %716 = vmatpush1.msra.mxu0 0.0
        %717 = vmatprep.subr.mxu0 0.0
        %718 = vmatpush1.msra.mxu0 0.0
        %719 = vmatprep.subr.mxu0 0.0
        %720 = vmatpush1.msra.mxu0 0.0
        %721 = vmatprep.subr.mxu0 0.0
        %722 = vmatpush1.msra.mxu0 0.0
        %723 = vmatprep.subr.mxu0 0.0
        %724 = vmatpush1.msra.mxu0 0.0
        %725 = vmatprep.subr.mxu0 0.0
        %726 = vmatpush1.msra.mxu0 0.0
        %727 = vmatprep.subr.mxu0 0.0
        %728 = vmatpush1.msra.mxu0 0.0
        %729 = vmatprep.subr.mxu0 0.0
        %730 = vmatpush1.msra.mxu0 0.0
        %731 = vmatprep.subr.mxu0 0.0
        %732 = vmatpush1.msra.mxu0 0.0
        %733 = vmatprep.subr.mxu0 0.0
        %734 = vmatpush1.msra.mxu0 0.0
        %735 = vmatprep.subr.mxu0 0.0
        %736 = vmatpush1.msra.mxu0 0.0
        %737 = vmatprep.subr.mxu0 0.0
        %738 = vmatpush1.msra.mxu0 0.0
        %739 = vmatprep.subr.mxu0 0.0
        %740 = vmatpush1.msra.mxu0 0.0
        %741 = vmatprep.subr.mxu0 0.0
        %742 = vmatpush1.msra.mxu0 0.0
        %743 = vmatprep.subr.mxu0 0.0
        %744 = vmatpush1.msra.mxu0 0.0
        %745 = vmatprep.subr.mxu0 0.0
        %746 = vmatpush1.msra.mxu0 0.0
        %747 = vmatprep.subr.mxu0 0.0
        %748 = vmatpush1.msra.mxu0 0.0
        %749 = vmatprep.subr.mxu0 0.0
        %750 = vmatpush1.msra.mxu0 0.0
        %751 = vmatprep.subr.mxu0 0.0
        %752 = vmatpush1.msra.mxu0 0.0
        %753 = vmatprep.subr.mxu0 0.0
        %754 = vmatpush1.msra.mxu0 0.0
        %755 = vmatprep.subr.mxu0 0.0
        %756 = vmatpush1.msra.mxu0 0.0
        %757 = vmatprep.subr.mxu0 0.0
        %758 = vmatpush1.msra.mxu0 0.0
        %759 = vmatprep.subr.mxu0 0.0
        %760 = vmatpush1.msra.mxu0 0.0
        %761 = vmatprep.subr.mxu0 0.0
        %762 = vmatpush1.msra.mxu0 0.0
        %763 = vmatprep.subr.mxu0 0.0
        %764 = vmatpush1.msra.mxu0 0.0
        %765 = vmatprep.subr.mxu0 0.0
        %766 = vmatpush1.msra.mxu0 0.0
        %767 = vmatprep.subr.mxu0 0.0
        %768 = vmatpush1.msra.mxu0 0.0
        %769 = vmatprep.subr.mxu0 0.0
        %770 = vmatpush1.msra.mxu0 0.0
        %771 = vmatprep.subr.mxu0 0.0
        %772 = vmatpush1.msra.mxu0 0.0
        %773 = vmatprep.mubr.f32.mxu0 0.0
        %774 = vmatmul.mubr.f32.gmra.mrb[0].mxu0 %v707
        %v775 = vpop.f32.mrb[0].mxu0
        %v776 = vadd.f32 0.0, %v775
        %v777 = vpop.f32.mrb[0].mxu0
        %778 = vdwg.mxu0
        %v779 = vrcp.pop %v705
        %v780 = vmul.f32 %v776, %v779
        %v781 = vld [vmem:[%s5] sm:$0xff]
        %v782 = vld [vmem:[#allocation3 + $0x8] sm:$0xff]
        %783 = vrot.lane.b32.xlu0 %v620, 120
        %v784 = vpop.permute.xlu0 %783
        %v785 = vsel %vm623, %v784, 0
        %787 = vmatprep.subr.mxu0 0.0
        %788 = vmatpush1.msra.mxu0 %v782
        %789 = vmatprep.subr.mxu0 0.0
        %790 = vmatpush1.msra.mxu0 0.0
        %791 = vmatprep.subr.mxu0 0.0
        %792 = vmatpush1.msra.mxu0 0.0
        %793 = vmatprep.subr.mxu0 0.0
        %794 = vmatpush1.msra.mxu0 0.0
        %795 = vmatprep.subr.mxu0 0.0
        %796 = vmatpush1.msra.mxu0 0.0
        %797 = vmatprep.subr.mxu0 0.0
        %798 = vmatpush1.msra.mxu0 0.0
        %799 = vmatprep.subr.mxu0 0.0
        %800 = vmatpush1.msra.mxu0 0.0
        %801 = vmatprep.subr.mxu0 0.0
        %802 = vmatpush1.msra.mxu0 0.0
        %803 = vmatprep.subr.mxu0 0.0
        %804 = vmatpush1.msra.mxu0 0.0
        %805 = vmatprep.subr.mxu0 0.0
        %806 = vmatpush1.msra.mxu0 0.0
        %807 = vmatprep.subr.mxu0 0.0
        %808 = vmatpush1.msra.mxu0 0.0
        %809 = vmatprep.subr.mxu0 0.0
        %810 = vmatpush1.msra.mxu0 0.0
        %811 = vmatprep.subr.mxu0 0.0
        %812 = vmatpush1.msra.mxu0 0.0
        %813 = vmatprep.subr.mxu0 0.0
        %814 = vmatpush1.msra.mxu0 0.0
        %815 = vmatprep.subr.mxu0 0.0
        %816 = vmatpush1.msra.mxu0 0.0
        %817 = vmatprep.subr.mxu0 0.0
        %818 = vmatpush1.msra.mxu0 0.0
        %819 = vmatprep.subr.mxu0 0.0
        %820 = vmatpush1.msra.mxu0 0.0
        %821 = vmatprep.subr.mxu0 0.0
        %822 = vmatpush1.msra.mxu0 0.0
        %823 = vmatprep.subr.mxu0 0.0
        %824 = vmatpush1.msra.mxu0 0.0
        %825 = vmatprep.subr.mxu0 0.0
        %826 = vmatpush1.msra.mxu0 0.0
        %827 = vmatprep.subr.mxu0 0.0
        %828 = vmatpush1.msra.mxu0 0.0
        %829 = vmatprep.subr.mxu0 0.0
        %830 = vmatpush1.msra.mxu0 0.0
        %831 = vmatprep.subr.mxu0 0.0
        %832 = vmatpush1.msra.mxu0 0.0
        %833 = vmatprep.subr.mxu0 0.0
        %834 = vmatpush1.msra.mxu0 0.0
        %835 = vmatprep.subr.mxu0 0.0
        %836 = vmatpush1.msra.mxu0 0.0
        %837 = vmatprep.subr.mxu0 0.0
        %838 = vmatpush1.msra.mxu0 0.0
        %839 = vmatprep.subr.mxu0 0.0
        %840 = vmatpush1.msra.mxu0 0.0
        %841 = vmatprep.subr.mxu0 0.0
        %842 = vmatpush1.msra.mxu0 0.0
        %843 = vmatprep.subr.mxu0 0.0
        %844 = vmatpush1.msra.mxu0 0.0
        %845 = vmatprep.subr.mxu0 0.0
        %846 = vmatpush1.msra.mxu0 0.0
        %847 = vmatprep.subr.mxu0 0.0
        %848 = vmatpush1.msra.mxu0 0.0
        %849 = vmatprep.subr.mxu0 0.0
        %850 = vmatpush1.msra.mxu0 0.0
        %851 = vmatprep.mubr.f32.mxu0 0.0
        %852 = vmatmul.mubr.f32.gmra.mrb[0].mxu0 %v785
        %v853 = vpop.f32.mrb[0].mxu0
        %v854 = vadd.f32 0.0, %v853
        %v855 = vpop.f32.mrb[0].mxu0
        %856 = vdwg.mxu0
        %v857 = vsel %vm623, %v854, -inf
        %858 = vmax.xlane.f32.xlu0 %v857
        %v859 = vpop.xlane.xlu0 %858
        %v860 = vsub.f32 %v854, %v859
        %v861 = vmul.f32 %v860, 1.442695
        %v862 = vpow.pop %v861
        %v863 = vsel %vm623, %v862, 0.0
        %864 = vadd.xlane.f32.xlu0 %v863
        %v865 = vpop.xlane.xlu0 %864
        %867 = vrot.lane.b32.xlu0 %v622, 120
        %v868 = vpop.permute.xlu0 %867
        %v871 = vsel %vm623, %v862, 0
        %873 = vmatprep.subr.mxu0 0.0
        %874 = vmatpush1.msra.mxu0 %v868
        %875 = vmatprep.subr.mxu0 0.0
        %876 = vmatpush1.msra.mxu0 0.0
        %877 = vmatprep.subr.mxu0 0.0
        %878 = vmatpush1.msra.mxu0 0.0
        %879 = vmatprep.subr.mxu0 0.0
        %880 = vmatpush1.msra.mxu0 0.0
        %881 = vmatprep.subr.mxu0 0.0
        %882 = vmatpush1.msra.mxu0 0.0
        %883 = vmatprep.subr.mxu0 0.0
        %884 = vmatpush1.msra.mxu0 0.0
        %885 = vmatprep.subr.mxu0 0.0
        %886 = vmatpush1.msra.mxu0 0.0
        %887 = vmatprep.subr.mxu0 0.0
        %888 = vmatpush1.msra.mxu0 0.0
        %889 = vmatprep.subr.mxu0 0.0
        %890 = vmatpush1.msra.mxu0 0.0
        %891 = vmatprep.subr.mxu0 0.0
        %892 = vmatpush1.msra.mxu0 0.0
        %893 = vmatprep.subr.mxu0 0.0
        %894 = vmatpush1.msra.mxu0 0.0
        %895 = vmatprep.subr.mxu0 0.0
        %896 = vmatpush1.msra.mxu0 0.0
        %897 = vmatprep.subr.mxu0 0.0
        %898 = vmatpush1.msra.mxu0 0.0
        %899 = vmatprep.subr.mxu0 0.0
        %900 = vmatpush1.msra.mxu0 0.0
        %901 = vmatprep.subr.mxu0 0.0
        %902 = vmatpush1.msra.mxu0 0.0
        %903 = vmatprep.subr.mxu0 0.0
        %904 = vmatpush1.msra.mxu0 0.0
        %905 = vmatprep.subr.mxu0 0.0
        %906 = vmatpush1.msra.mxu0 0.0
        %907 = vmatprep.subr.mxu0 0.0
        %908 = vmatpush1.msra.mxu0 0.0
        %909 = vmatprep.subr.mxu0 0.0
        %910 = vmatpush1.msra.mxu0 0.0
        %911 = vmatprep.subr.mxu0 0.0
        %912 = vmatpush1.msra.mxu0 0.0
        %913 = vmatprep.subr.mxu0 0.0
        %914 = vmatpush1.msra.mxu0 0.0
        %915 = vmatprep.subr.mxu0 0.0
        %916 = vmatpush1.msra.mxu0 0.0
        %917 = vmatprep.subr.mxu0 0.0
        %918 = vmatpush1.msra.mxu0 0.0
        %919 = vmatprep.subr.mxu0 0.0
        %920 = vmatpush1.msra.mxu0 0.0
        %921 = vmatprep.subr.mxu0 0.0
        %922 = vmatpush1.msra.mxu0 0.0
        %923 = vmatprep.subr.mxu0 0.0
        %924 = vmatpush1.msra.mxu0 0.0
        %925 = vmatprep.subr.mxu0 0.0
        %926 = vmatpush1.msra.mxu0 0.0
        %927 = vmatprep.subr.mxu0 0.0
        %928 = vmatpush1.msra.mxu0 0.0
        %929 = vmatprep.subr.mxu0 0.0
        %930 = vmatpush1.msra.mxu0 0.0
        %931 = vmatprep.subr.mxu0 0.0
        %932 = vmatpush1.msra.mxu0 0.0
        %933 = vmatprep.subr.mxu0 0.0
        %934 = vmatpush1.msra.mxu0 0.0
        %935 = vmatprep.subr.mxu0 0.0
        %936 = vmatpush1.msra.mxu0 0.0
        %937 = vmatprep.mubr.f32.mxu0 0.0
        %938 = vmatmul.mubr.f32.gmra.mrb[0].mxu0 %v871
        %v939 = vpop.f32.mrb[0].mxu0
        %v940 = vadd.f32 0.0, %v939
        %v941 = vpop.f32.mrb[0].mxu0
        %942 = vdwg.mxu0
        %v943 = vrcp.pop %v865
        %v944 = vmul.f32 %v940, %v943
        %v945 = vld [vmem:[%s5 + $0x8] sm:$0xff]
        %v947 = vsel %vm623, %v944, 0
        %949 = vmatprep.subr.mxu0 0.0
        %950 = vmatpush1.msra.mxu0 %v945
        %951 = vmatprep.subr.mxu0 0.0
        %952 = vmatpush1.msra.mxu0 0.0
        %953 = vmatprep.subr.mxu0 0.0
        %954 = vmatpush1.msra.mxu0 0.0
        %955 = vmatprep.subr.mxu0 0.0
        %956 = vmatpush1.msra.mxu0 0.0
        %957 = vmatprep.subr.mxu0 0.0
        %958 = vmatpush1.msra.mxu0 0.0
        %959 = vmatprep.subr.mxu0 0.0
        %960 = vmatpush1.msra.mxu0 0.0
        %961 = vmatprep.subr.mxu0 0.0
        %962 = vmatpush1.msra.mxu0 0.0
        %963 = vmatprep.subr.mxu0 0.0
        %964 = vmatpush1.msra.mxu0 0.0
        %965 = vmatprep.subr.mxu0 0.0
        %966 = vmatpush1.msra.mxu0 0.0
        %967 = vmatprep.subr.mxu0 0.0
        %968 = vmatpush1.msra.mxu0 0.0
        %969 = vmatprep.subr.mxu0 0.0
        %970 = vmatpush1.msra.mxu0 0.0
        %971 = vmatprep.subr.mxu0 0.0
        %972 = vmatpush1.msra.mxu0 0.0
        %973 = vmatprep.subr.mxu0 0.0
        %974 = vmatpush1.msra.mxu0 0.0
        %975 = vmatprep.subr.mxu0 0.0
        %976 = vmatpush1.msra.mxu0 0.0
        %977 = vmatprep.subr.mxu0 0.0
        %978 = vmatpush1.msra.mxu0 0.0
        %979 = vmatprep.subr.mxu0 0.0
        %980 = vmatpush1.msra.mxu0 0.0
        %981 = vmatprep.subr.mxu0 0.0
        %982 = vmatpush1.msra.mxu0 0.0
        %983 = vmatprep.subr.mxu0 0.0
        %984 = vmatpush1.msra.mxu0 0.0
        %985 = vmatprep.subr.mxu0 0.0
        %986 = vmatpush1.msra.mxu0 0.0
        %987 = vmatprep.subr.mxu0 0.0
        %988 = vmatpush1.msra.mxu0 0.0
        %989 = vmatprep.subr.mxu0 0.0
        %990 = vmatpush1.msra.mxu0 0.0
        %991 = vmatprep.subr.mxu0 0.0
        %992 = vmatpush1.msra.mxu0 0.0
        %993 = vmatprep.subr.mxu0 0.0
        %994 = vmatpush1.msra.mxu0 0.0
        %995 = vmatprep.subr.mxu0 0.0
        %996 = vmatpush1.msra.mxu0 0.0
        %997 = vmatprep.subr.mxu0 0.0
        %998 = vmatpush1.msra.mxu0 0.0
        %999 = vmatprep.subr.mxu0 0.0
        %1000 = vmatpush1.msra.mxu0 0.0
        %1001 = vmatprep.subr.mxu0 0.0
        %1002 = vmatpush1.msra.mxu0 0.0
        %1003 = vmatprep.subr.mxu0 0.0
        %1004 = vmatpush1.msra.mxu0 0.0
        %1005 = vmatprep.subr.mxu0 0.0
        %1006 = vmatpush1.msra.mxu0 0.0
        %1007 = vmatprep.subr.mxu0 0.0
        %1008 = vmatpush1.msra.mxu0 0.0
        %1009 = vmatprep.subr.mxu0 0.0
        %1010 = vmatpush1.msra.mxu0 0.0
        %1011 = vmatprep.subr.mxu0 0.0
        %1012 = vmatpush1.msra.mxu0 0.0
        %1013 = vmatprep.mubr.f32.mxu0 0.0
        %1014 = vmatmul.mubr.f32.gmra.mrb[0].mxu0 %v947
        %v1015 = vpop.f32.mrb[0].mxu0
        %v1016 = vadd.f32 0.0, %v1015
        %v1017 = vpop.f32.mrb[0].mxu0
        %1018 = vdwg.mxu0
        %v1020 = vsel %vm623, %v780, 0
        %1022 = vmatprep.subr.mxu0 0.0
        %1023 = vmatpush1.msra.mxu0 %v781
        %1024 = vmatprep.subr.mxu0 0.0
        %1025 = vmatpush1.msra.mxu0 0.0
        %1026 = vmatprep.subr.mxu0 0.0
        %1027 = vmatpush1.msra.mxu0 0.0
        %1028 = vmatprep.subr.mxu0 0.0
        %1029 = vmatpush1.msra.mxu0 0.0
        %1030 = vmatprep.subr.mxu0 0.0
        %1031 = vmatpush1.msra.mxu0 0.0
        %1032 = vmatprep.subr.mxu0 0.0
        %1033 = vmatpush1.msra.mxu0 0.0
        %1034 = vmatprep.subr.mxu0 0.0
        %1035 = vmatpush1.msra.mxu0 0.0
        %1036 = vmatprep.subr.mxu0 0.0
        %1037 = vmatpush1.msra.mxu0 0.0
        %1038 = vmatprep.subr.mxu0 0.0
        %1039 = vmatpush1.msra.mxu0 0.0
        %1040 = vmatprep.subr.mxu0 0.0
        %1041 = vmatpush1.msra.mxu0 0.0
        %1042 = vmatprep.subr.mxu0 0.0
        %1043 = vmatpush1.msra.mxu0 0.0
        %1044 = vmatprep.subr.mxu0 0.0
        %1045 = vmatpush1.msra.mxu0 0.0
        %1046 = vmatprep.subr.mxu0 0.0
        %1047 = vmatpush1.msra.mxu0 0.0
        %1048 = vmatprep.subr.mxu0 0.0
        %1049 = vmatpush1.msra.mxu0 0.0
        %1050 = vmatprep.subr.mxu0 0.0
        %1051 = vmatpush1.msra.mxu0 0.0
        %1052 = vmatprep.subr.mxu0 0.0
        %1053 = vmatpush1.msra.mxu0 0.0
        %1054 = vmatprep.subr.mxu0 0.0
        %1055 = vmatpush1.msra.mxu0 0.0
        %1056 = vmatprep.subr.mxu0 0.0
        %1057 = vmatpush1.msra.mxu0 0.0
        %1058 = vmatprep.subr.mxu0 0.0
        %1059 = vmatpush1.msra.mxu0 0.0
        %1060 = vmatprep.subr.mxu0 0.0
        %1061 = vmatpush1.msra.mxu0 0.0
        %1062 = vmatprep.subr.mxu0 0.0
        %1063 = vmatpush1.msra.mxu0 0.0
        %1064 = vmatprep.subr.mxu0 0.0
        %1065 = vmatpush1.msra.mxu0 0.0
        %1066 = vmatprep.subr.mxu0 0.0
        %1067 = vmatpush1.msra.mxu0 0.0
        %1068 = vmatprep.subr.mxu0 0.0
        %1069 = vmatpush1.msra.mxu0 0.0
        %1070 = vmatprep.subr.mxu0 0.0
        %1071 = vmatpush1.msra.mxu0 0.0
        %1072 = vmatprep.subr.mxu0 0.0
        %1073 = vmatpush1.msra.mxu0 0.0
        %1074 = vmatprep.subr.mxu0 0.0
        %1075 = vmatpush1.msra.mxu0 0.0
        %1076 = vmatprep.subr.mxu0 0.0
        %1077 = vmatpush1.msra.mxu0 0.0
        %1078 = vmatprep.subr.mxu0 0.0
        %1079 = vmatpush1.msra.mxu0 0.0
        %1080 = vmatprep.subr.mxu0 0.0
        %1081 = vmatpush1.msra.mxu0 0.0
        %1082 = vmatprep.subr.mxu0 0.0
        %1083 = vmatpush1.msra.mxu0 0.0
        %1084 = vmatprep.subr.mxu0 0.0
        %1085 = vmatpush1.msra.mxu0 0.0
        %1086 = vmatprep.mubr.f32.mxu0 0.0
        %1087 = vmatmul.mubr.f32.gmra.mrb[0].mxu0 %v1020
        %v1088 = vpop.f32.mrb[0].mxu0
        %v1089 = vadd.f32 %v1016, %v1088
        %v1090 = vpop.f32.mrb[0].mxu0
        %1091 = vdwg.mxu0
        %v1092 = vld [vmem:[#allocation3 + $0x10] sm:$0xff]
        %1093 = vrot.lane.b32.xlu0 %v620, 112
        %v1094 = vpop.permute.xlu0 %1093
        %v1095 = vsel %vm623, %v1094, 0
        %1097 = vmatprep.subr.mxu0 0.0
        %1098 = vmatpush1.msra.mxu0 %v1092
        %1099 = vmatprep.subr.mxu0 0.0
        %1100 = vmatpush1.msra.mxu0 0.0
        %1101 = vmatprep.subr.mxu0 0.0
        %1102 = vmatpush1.msra.mxu0 0.0
        %1103 = vmatprep.subr.mxu0 0.0
        %1104 = vmatpush1.msra.mxu0 0.0
        %1105 = vmatprep.subr.mxu0 0.0
        %1106 = vmatpush1.msra.mxu0 0.0
        %1107 = vmatprep.subr.mxu0 0.0
        %1108 = vmatpush1.msra.mxu0 0.0
        %1109 = vmatprep.subr.mxu0 0.0
        %1110 = vmatpush1.msra.mxu0 0.0
        %1111 = vmatprep.subr.mxu0 0.0
        %1112 = vmatpush1.msra.mxu0 0.0
        %1113 = vmatprep.subr.mxu0 0.0
        %1114 = vmatpush1.msra.mxu0 0.0
        %1115 = vmatprep.subr.mxu0 0.0
        %1116 = vmatpush1.msra.mxu0 0.0
        %1117 = vmatprep.subr.mxu0 0.0
        %1118 = vmatpush1.msra.mxu0 0.0
        %1119 = vmatprep.subr.mxu0 0.0
        %1120 = vmatpush1.msra.mxu0 0.0
        %1121 = vmatprep.subr.mxu0 0.0
        %1122 = vmatpush1.msra.mxu0 0.0
        %1123 = vmatprep.subr.mxu0 0.0
        %1124 = vmatpush1.msra.mxu0 0.0
        %1125 = vmatprep.subr.mxu0 0.0
        %1126 = vmatpush1.msra.mxu0 0.0
        %1127 = vmatprep.subr.mxu0 0.0
        %1128 = vmatpush1.msra.mxu0 0.0
        %1129 = vmatprep.subr.mxu0 0.0
        %1130 = vmatpush1.msra.mxu0 0.0
        %1131 = vmatprep.subr.mxu0 0.0
        %1132 = vmatpush1.msra.mxu0 0.0
        %1133 = vmatprep.subr.mxu0 0.0
        %1134 = vmatpush1.msra.mxu0 0.0
        %1135 = vmatprep.subr.mxu0 0.0
        %1136 = vmatpush1.msra.mxu0 0.0
        %1137 = vmatprep.subr.mxu0 0.0
        %1138 = vmatpush1.msra.mxu0 0.0
        %1139 = vmatprep.subr.mxu0 0.0
        %1140 = vmatpush1.msra.mxu0 0.0
        %1141 = vmatprep.subr.mxu0 0.0
        %1142 = vmatpush1.msra.mxu0 0.0
        %1143 = vmatprep.subr.mxu0 0.0
        %1144 = vmatpush1.msra.mxu0 0.0
        %1145 = vmatprep.subr.mxu0 0.0
        %1146 = vmatpush1.msra.mxu0 0.0
        %1147 = vmatprep.subr.mxu0 0.0
        %1148 = vmatpush1.msra.mxu0 0.0
        %1149 = vmatprep.subr.mxu0 0.0
        %1150 = vmatpush1.msra.mxu0 0.0
        %1151 = vmatprep.subr.mxu0 0.0
        %1152 = vmatpush1.msra.mxu0 0.0
        %1153 = vmatprep.subr.mxu0 0.0
        %1154 = vmatpush1.msra.mxu0 0.0
        %1155 = vmatprep.subr.mxu0 0.0
        %1156 = vmatpush1.msra.mxu0 0.0
        %1157 = vmatprep.subr.mxu0 0.0
        %1158 = vmatpush1.msra.mxu0 0.0
        %1159 = vmatprep.subr.mxu0 0.0
        %1160 = vmatpush1.msra.mxu0 0.0
        %1161 = vmatprep.mubr.f32.mxu0 0.0
        %1162 = vmatmul.mubr.f32.gmra.mrb[0].mxu0 %v1095
        %v1163 = vpop.f32.mrb[0].mxu0
        %v1164 = vadd.f32 0.0, %v1163
        %v1165 = vpop.f32.mrb[0].mxu0
        %1166 = vdwg.mxu0
        %v1167 = vsel %vm623, %v1164, -inf
        %1168 = vmax.xlane.f32.xlu0 %v1167
        %v1169 = vpop.xlane.xlu0 %1168
        %v1170 = vsub.f32 %v1164, %v1169
        %v1171 = vmul.f32 %v1170, 1.442695
        %v1172 = vpow.pop %v1171
        %v1173 = vsel %vm623, %v1172, 0.0
        %1174 = vadd.xlane.f32.xlu0 %v1173
        %v1175 = vpop.xlane.xlu0 %1174
        %1176 = vrot.lane.b32.xlu0 %v622, 112
        %v1177 = vpop.permute.xlu0 %1176
        %v1180 = vsel %vm623, %v1172, 0
        %1182 = vmatprep.subr.mxu0 0.0
        %1183 = vmatpush1.msra.mxu0 %v1177
        %1184 = vmatprep.subr.mxu0 0.0
        %1185 = vmatpush1.msra.mxu0 0.0
        %1186 = vmatprep.subr.mxu0 0.0
        %1187 = vmatpush1.msra.mxu0 0.0
        %1188 = vmatprep.subr.mxu0 0.0
        %1189 = vmatpush1.msra.mxu0 0.0
        %1190 = vmatprep.subr.mxu0 0.0
        %1191 = vmatpush1.msra.mxu0 0.0
        %1192 = vmatprep.subr.mxu0 0.0
        %1193 = vmatpush1.msra.mxu0 0.0
        %1194 = vmatprep.subr.mxu0 0.0
        %1195 = vmatpush1.msra.mxu0 0.0
        %1196 = vmatprep.subr.mxu0 0.0
        %1197 = vmatpush1.msra.mxu0 0.0
        %1198 = vmatprep.subr.mxu0 0.0
        %1199 = vmatpush1.msra.mxu0 0.0
        %1200 = vmatprep.subr.mxu0 0.0
        %1201 = vmatpush1.msra.mxu0 0.0
        %1202 = vmatprep.subr.mxu0 0.0
        %1203 = vmatpush1.msra.mxu0 0.0
        %1204 = vmatprep.subr.mxu0 0.0
        %1205 = vmatpush1.msra.mxu0 0.0
        %1206 = vmatprep.subr.mxu0 0.0
        %1207 = vmatpush1.msra.mxu0 0.0
        %1208 = vmatprep.subr.mxu0 0.0
        %1209 = vmatpush1.msra.mxu0 0.0
        %1210 = vmatprep.subr.mxu0 0.0
        %1211 = vmatpush1.msra.mxu0 0.0
        %1212 = vmatprep.subr.mxu0 0.0
        %1213 = vmatpush1.msra.mxu0 0.0
        %1214 = vmatprep.subr.mxu0 0.0
        %1215 = vmatpush1.msra.mxu0 0.0
        %1216 = vmatprep.subr.mxu0 0.0
        %1217 = vmatpush1.msra.mxu0 0.0
        %1218 = vmatprep.subr.mxu0 0.0
        %1219 = vmatpush1.msra.mxu0 0.0
        %1220 = vmatprep.subr.mxu0 0.0
        %1221 = vmatpush1.msra.mxu0 0.0
        %1222 = vmatprep.subr.mxu0 0.0
        %1223 = vmatpush1.msra.mxu0 0.0
        %1224 = vmatprep.subr.mxu0 0.0
        %1225 = vmatpush1.msra.mxu0 0.0
        %1226 = vmatprep.subr.mxu0 0.0
        %1227 = vmatpush1.msra.mxu0 0.0
        %1228 = vmatprep.subr.mxu0 0.0
        %1229 = vmatpush1.msra.mxu0 0.0
        %1230 = vmatprep.subr.mxu0 0.0
        %1231 = vmatpush1.msra.mxu0 0.0
        %1232 = vmatprep.subr.mxu0 0.0
        %1233 = vmatpush1.msra.mxu0 0.0
        %1234 = vmatprep.subr.mxu0 0.0
        %1235 = vmatpush1.msra.mxu0 0.0
        %1236 = vmatprep.subr.mxu0 0.0
        %1237 = vmatpush1.msra.mxu0 0.0
        %1238 = vmatprep.subr.mxu0 0.0
        %1239 = vmatpush1.msra.mxu0 0.0
        %1240 = vmatprep.subr.mxu0 0.0
        %1241 = vmatpush1.msra.mxu0 0.0
        %1242 = vmatprep.subr.mxu0 0.0
        %1243 = vmatpush1.msra.mxu0 0.0
        %1244 = vmatprep.subr.mxu0 0.0
        %1245 = vmatpush1.msra.mxu0 0.0
        %1246 = vmatprep.mubr.f32.mxu0 0.0
        %1247 = vmatmul.mubr.f32.gmra.mrb[0].mxu0 %v1180
        %v1248 = vpop.f32.mrb[0].mxu0
        %v1249 = vadd.f32 0.0, %v1248
        %v1250 = vpop.f32.mrb[0].mxu0
        %1251 = vdwg.mxu0
        %v1252 = vrcp.pop %v1175
        %v1253 = vmul.f32 %v1249, %v1252
        %v1254 = vld [vmem:[%s5 + $0x10] sm:$0xff]
        %v1256 = vsel %vm623, %v1253, 0
        %1258 = vmatprep.subr.mxu0 0.0
        %1259 = vmatpush1.msra.mxu0 %v1254
        %1260 = vmatprep.subr.mxu0 0.0
        %1261 = vmatpush1.msra.mxu0 0.0
        %1262 = vmatprep.subr.mxu0 0.0
        %1263 = vmatpush1.msra.mxu0 0.0
        %1264 = vmatprep.subr.mxu0 0.0
        %1265 = vmatpush1.msra.mxu0 0.0
        %1266 = vmatprep.subr.mxu0 0.0
        %1267 = vmatpush1.msra.mxu0 0.0
        %1268 = vmatprep.subr.mxu0 0.0
        %1269 = vmatpush1.msra.mxu0 0.0
        %1270 = vmatprep.subr.mxu0 0.0
        %1271 = vmatpush1.msra.mxu0 0.0
        %1272 = vmatprep.subr.mxu0 0.0
        %1273 = vmatpush1.msra.mxu0 0.0
        %1274 = vmatprep.subr.mxu0 0.0
        %1275 = vmatpush1.msra.mxu0 0.0
        %1276 = vmatprep.subr.mxu0 0.0
        %1277 = vmatpush1.msra.mxu0 0.0
        %1278 = vmatprep.subr.mxu0 0.0
        %1279 = vmatpush1.msra.mxu0 0.0
        %1280 = vmatprep.subr.mxu0 0.0
        %1281 = vmatpush1.msra.mxu0 0.0
        %1282 = vmatprep.subr.mxu0 0.0
        %1283 = vmatpush1.msra.mxu0 0.0
        %1284 = vmatprep.subr.mxu0 0.0
        %1285 = vmatpush1.msra.mxu0 0.0
        %1286 = vmatprep.subr.mxu0 0.0
        %1287 = vmatpush1.msra.mxu0 0.0
        %1288 = vmatprep.subr.mxu0 0.0
        %1289 = vmatpush1.msra.mxu0 0.0
        %1290 = vmatprep.subr.mxu0 0.0
        %1291 = vmatpush1.msra.mxu0 0.0
        %1292 = vmatprep.subr.mxu0 0.0
        %1293 = vmatpush1.msra.mxu0 0.0
        %1294 = vmatprep.subr.mxu0 0.0
        %1295 = vmatpush1.msra.mxu0 0.0
        %1296 = vmatprep.subr.mxu0 0.0
        %1297 = vmatpush1.msra.mxu0 0.0
        %1298 = vmatprep.subr.mxu0 0.0
        %1299 = vmatpush1.msra.mxu0 0.0
        %1300 = vmatprep.subr.mxu0 0.0
        %1301 = vmatpush1.msra.mxu0 0.0
        %1302 = vmatprep.subr.mxu0 0.0
        %1303 = vmatpush1.msra.mxu0 0.0
        %1304 = vmatprep.subr.mxu0 0.0
        %1305 = vmatpush1.msra.mxu0 0.0
        %1306 = vmatprep.subr.mxu0 0.0
        %1307 = vmatpush1.msra.mxu0 0.0
        %1308 = vmatprep.subr.mxu0 0.0
        %1309 = vmatpush1.msra.mxu0 0.0
        %1310 = vmatprep.subr.mxu0 0.0
        %1311 = vmatpush1.msra.mxu0 0.0
        %1312 = vmatprep.subr.mxu0 0.0
        %1313 = vmatpush1.msra.mxu0 0.0
        %1314 = vmatprep.subr.mxu0 0.0
        %1315 = vmatpush1.msra.mxu0 0.0
        %1316 = vmatprep.subr.mxu0 0.0
        %1317 = vmatpush1.msra.mxu0 0.0
        %1318 = vmatprep.subr.mxu0 0.0
        %1319 = vmatpush1.msra.mxu0 0.0
        %1320 = vmatprep.subr.mxu0 0.0
        %1321 = vmatpush1.msra.mxu0 0.0
        %1322 = vmatprep.mubr.f32.mxu0 0.0
        %1323 = vmatmul.mubr.f32.gmra.mrb[0].mxu0 %v1256
        %v1324 = vpop.f32.mrb[0].mxu0
        %v1325 = vadd.f32 0.0, %v1324
        %v1326 = vpop.f32.mrb[0].mxu0
        %1327 = vdwg.mxu0
        %v1328 = vadd.f32 %v1089, %v1325
        %v1329 = vld [vmem:[#allocation3 + $0x18] sm:$0xff]
        %1330 = vrot.lane.b32.xlu0 %v620, 104
        %v1331 = vpop.permute.xlu0 %1330
        %v1332 = vsel %vm623, %v1331, 0
        %1334 = vmatprep.subr.mxu0 0.0
        %1335 = vmatpush1.msra.mxu0 %v1329
        %1336 = vmatprep.subr.mxu0 0.0
        %1337 = vmatpush1.msra.mxu0 0.0
        %1338 = vmatprep.subr.mxu0 0.0
        %1339 = vmatpush1.msra.mxu0 0.0
        %1340 = vmatprep.subr.mxu0 0.0
        %1341 = vmatpush1.msra.mxu0 0.0
        %1342 = vmatprep.subr.mxu0 0.0
        %1343 = vmatpush1.msra.mxu0 0.0
        %1344 = vmatprep.subr.mxu0 0.0
        %1345 = vmatpush1.msra.mxu0 0.0
        %1346 = vmatprep.subr.mxu0 0.0
        %1347 = vmatpush1.msra.mxu0 0.0
        %1348 = vmatprep.subr.mxu0 0.0
        %1349 = vmatpush1.msra.mxu0 0.0
        %1350 = vmatprep.subr.mxu0 0.0
        %1351 = vmatpush1.msra.mxu0 0.0
        %1352 = vmatprep.subr.mxu0 0.0
        %1353 = vmatpush1.msra.mxu0 0.0
        %1354 = vmatprep.subr.mxu0 0.0
        %1355 = vmatpush1.msra.mxu0 0.0
        %1356 = vmatprep.subr.mxu0 0.0
        %1357 = vmatpush1.msra.mxu0 0.0
        %1358 = vmatprep.subr.mxu0 0.0
        %1359 = vmatpush1.msra.mxu0 0.0
        %1360 = vmatprep.subr.mxu0 0.0
        %1361 = vmatpush1.msra.mxu0 0.0
        %1362 = vmatprep.subr.mxu0 0.0
        %1363 = vmatpush1.msra.mxu0 0.0
        %1364 = vmatprep.subr.mxu0 0.0
        %1365 = vmatpush1.msra.mxu0 0.0
        %1366 = vmatprep.subr.mxu0 0.0
        %1367 = vmatpush1.msra.mxu0 0.0
        %1368 = vmatprep.subr.mxu0 0.0
        %1369 = vmatpush1.msra.mxu0 0.0
        %1370 = vmatprep.subr.mxu0 0.0
        %1371 = vmatpush1.msra.mxu0 0.0
        %1372 = vmatprep.subr.mxu0 0.0
        %1373 = vmatpush1.msra.mxu0 0.0
        %1374 = vmatprep.subr.mxu0 0.0
        %1375 = vmatpush1.msra.mxu0 0.0
        %1376 = vmatprep.subr.mxu0 0.0
        %1377 = vmatpush1.msra.mxu0 0.0
        %1378 = vmatprep.subr.mxu0 0.0
        %1379 = vmatpush1.msra.mxu0 0.0
        %1380 = vmatprep.subr.mxu0 0.0
        %1381 = vmatpush1.msra.mxu0 0.0
        %1382 = vmatprep.subr.mxu0 0.0
        %1383 = vmatpush1.msra.mxu0 0.0
        %1384 = vmatprep.subr.mxu0 0.0
        %1385 = vmatpush1.msra.mxu0 0.0
        %1386 = vmatprep.subr.mxu0 0.0
        %1387 = vmatpush1.msra.mxu0 0.0
        %1388 = vmatprep.subr.mxu0 0.0
        %1389 = vmatpush1.msra.mxu0 0.0
        %1390 = vmatprep.subr.mxu0 0.0
        %1391 = vmatpush1.msra.mxu0 0.0
        %1392 = vmatprep.subr.mxu0 0.0
        %1393 = vmatpush1.msra.mxu0 0.0
        %1394 = vmatprep.subr.mxu0 0.0
        %1395 = vmatpush1.msra.mxu0 0.0
        %1396 = vmatprep.subr.mxu0 0.0
        %1397 = vmatpush1.msra.mxu0 0.0
        %1398 = vmatprep.mubr.f32.mxu0 0.0
        %1399 = vmatmul.mubr.f32.gmra.mrb[0].mxu0 %v1332
        %v1400 = vpop.f32.mrb[0].mxu0
        %v1401 = vadd.f32 0.0, %v1400
        %v1402 = vpop.f32.mrb[0].mxu0
        %1403 = vdwg.mxu0
        %v1404 = vsel %vm623, %v1401, -inf
        %1405 = vmax.xlane.f32.xlu0 %v1404
        %v1406 = vpop.xlane.xlu0 %1405
        %v1407 = vsub.f32 %v1401, %v1406
        %v1408 = vmul.f32 %v1407, 1.442695
        %v1409 = vpow.pop %v1408
        %v1410 = vsel %vm623, %v1409, 0.0
        %1411 = vadd.xlane.f32.xlu0 %v1410
        %v1412 = vpop.xlane.xlu0 %1411
        %1413 = vrot.lane.b32.xlu0 %v622, 104
        %v1414 = vpop.permute.xlu0 %1413
        %v1417 = vsel %vm623, %v1409, 0
        %1419 = vmatprep.subr.mxu0 0.0
        %1420 = vmatpush1.msra.mxu0 %v1414
        %1421 = vmatprep.subr.mxu0 0.0
        %1422 = vmatpush1.msra.mxu0 0.0
        %1423 = vmatprep.subr.mxu0 0.0
        %1424 = vmatpush1.msra.mxu0 0.0
        %1425 = vmatprep.subr.mxu0 0.0
        %1426 = vmatpush1.msra.mxu0 0.0
        %1427 = vmatprep.subr.mxu0 0.0
        %1428 = vmatpush1.msra.mxu0 0.0
        %1429 = vmatprep.subr.mxu0 0.0
        %1430 = vmatpush1.msra.mxu0 0.0
        %1431 = vmatprep.subr.mxu0 0.0
        %1432 = vmatpush1.msra.mxu0 0.0
        %1433 = vmatprep.subr.mxu0 0.0
        %1434 = vmatpush1.msra.mxu0 0.0
        %1435 = vmatprep.subr.mxu0 0.0
        %1436 = vmatpush1.msra.mxu0 0.0
        %1437 = vmatprep.subr.mxu0 0.0
        %1438 = vmatpush1.msra.mxu0 0.0
        %1439 = vmatprep.subr.mxu0 0.0
        %1440 = vmatpush1.msra.mxu0 0.0
        %1441 = vmatprep.subr.mxu0 0.0
        %1442 = vmatpush1.msra.mxu0 0.0
        %1443 = vmatprep.subr.mxu0 0.0
        %1444 = vmatpush1.msra.mxu0 0.0
        %1445 = vmatprep.subr.mxu0 0.0
        %1446 = vmatpush1.msra.mxu0 0.0
        %1447 = vmatprep.subr.mxu0 0.0
        %1448 = vmatpush1.msra.mxu0 0.0
        %1449 = vmatprep.subr.mxu0 0.0
        %1450 = vmatpush1.msra.mxu0 0.0
        %1451 = vmatprep.subr.mxu0 0.0
        %1452 = vmatpush1.msra.mxu0 0.0
        %1453 = vmatprep.subr.mxu0 0.0
        %1454 = vmatpush1.msra.mxu0 0.0
        %1455 = vmatprep.subr.mxu0 0.0
        %1456 = vmatpush1.msra.mxu0 0.0
        %1457 = vmatprep.subr.mxu0 0.0
        %1458 = vmatpush1.msra.mxu0 0.0
        %1459 = vmatprep.subr.mxu0 0.0
        %1460 = vmatpush1.msra.mxu0 0.0
        %1461 = vmatprep.subr.mxu0 0.0
        %1462 = vmatpush1.msra.mxu0 0.0
        %1463 = vmatprep.subr.mxu0 0.0
        %1464 = vmatpush1.msra.mxu0 0.0
        %1465 = vmatprep.subr.mxu0 0.0
        %1466 = vmatpush1.msra.mxu0 0.0
        %1467 = vmatprep.subr.mxu0 0.0
        %1468 = vmatpush1.msra.mxu0 0.0
        %1469 = vmatprep.subr.mxu0 0.0
        %1470 = vmatpush1.msra.mxu0 0.0
        %1471 = vmatprep.subr.mxu0 0.0
        %1472 = vmatpush1.msra.mxu0 0.0
        %1473 = vmatprep.subr.mxu0 0.0
        %1474 = vmatpush1.msra.mxu0 0.0
        %1475 = vmatprep.subr.mxu0 0.0
        %1476 = vmatpush1.msra.mxu0 0.0
        %1477 = vmatprep.subr.mxu0 0.0
        %1478 = vmatpush1.msra.mxu0 0.0
        %1479 = vmatprep.subr.mxu0 0.0
        %1480 = vmatpush1.msra.mxu0 0.0
        %1481 = vmatprep.subr.mxu0 0.0
        %1482 = vmatpush1.msra.mxu0 0.0
        %1483 = vmatprep.mubr.f32.mxu0 0.0
        %1484 = vmatmul.mubr.f32.gmra.mrb[0].mxu0 %v1417
        %v1485 = vpop.f32.mrb[0].mxu0
        %v1486 = vadd.f32 0.0, %v1485
        %v1487 = vpop.f32.mrb[0].mxu0
        %1488 = vdwg.mxu0
        %v1489 = vrcp.pop %v1412
        %v1490 = vmul.f32 %v1486, %v1489
        %v1491 = vld [vmem:[%s5 + $0x18] sm:$0xff]
        %v1493 = vsel %vm623, %v1490, 0
        %1495 = vmatprep.subr.mxu0 0.0
        %1496 = vmatpush1.msra.mxu0 %v1491
        %1497 = vmatprep.subr.mxu0 0.0
        %1498 = vmatpush1.msra.mxu0 0.0
        %1499 = vmatprep.subr.mxu0 0.0
        %1500 = vmatpush1.msra.mxu0 0.0
        %1501 = vmatprep.subr.mxu0 0.0
        %1502 = vmatpush1.msra.mxu0 0.0
        %1503 = vmatprep.subr.mxu0 0.0
        %1504 = vmatpush1.msra.mxu0 0.0
        %1505 = vmatprep.subr.mxu0 0.0
        %1506 = vmatpush1.msra.mxu0 0.0
        %1507 = vmatprep.subr.mxu0 0.0
        %1508 = vmatpush1.msra.mxu0 0.0
        %1509 = vmatprep.subr.mxu0 0.0
        %1510 = vmatpush1.msra.mxu0 0.0
        %1511 = vmatprep.subr.mxu0 0.0
        %1512 = vmatpush1.msra.mxu0 0.0
        %1513 = vmatprep.subr.mxu0 0.0
        %1514 = vmatpush1.msra.mxu0 0.0
        %1515 = vmatprep.subr.mxu0 0.0
        %1516 = vmatpush1.msra.mxu0 0.0
        %1517 = vmatprep.subr.mxu0 0.0
        %1518 = vmatpush1.msra.mxu0 0.0
        %1519 = vmatprep.subr.mxu0 0.0
        %1520 = vmatpush1.msra.mxu0 0.0
        %1521 = vmatprep.subr.mxu0 0.0
        %1522 = vmatpush1.msra.mxu0 0.0
        %1523 = vmatprep.subr.mxu0 0.0
        %1524 = vmatpush1.msra.mxu0 0.0
        %1525 = vmatprep.subr.mxu0 0.0
        %1526 = vmatpush1.msra.mxu0 0.0
        %1527 = vmatprep.subr.mxu0 0.0
        %1528 = vmatpush1.msra.mxu0 0.0
        %1529 = vmatprep.subr.mxu0 0.0
        %1530 = vmatpush1.msra.mxu0 0.0
        %1531 = vmatprep.subr.mxu0 0.0
        %1532 = vmatpush1.msra.mxu0 0.0
        %1533 = vmatprep.subr.mxu0 0.0
        %1534 = vmatpush1.msra.mxu0 0.0
        %1535 = vmatprep.subr.mxu0 0.0
        %1536 = vmatpush1.msra.mxu0 0.0
        %1537 = vmatprep.subr.mxu0 0.0
        %1538 = vmatpush1.msra.mxu0 0.0
        %1539 = vmatprep.subr.mxu0 0.0
        %1540 = vmatpush1.msra.mxu0 0.0
        %1541 = vmatprep.subr.mxu0 0.0
        %1542 = vmatpush1.msra.mxu0 0.0
        %1543 = vmatprep.subr.mxu0 0.0
        %1544 = vmatpush1.msra.mxu0 0.0
        %1545 = vmatprep.subr.mxu0 0.0
        %1546 = vmatpush1.msra.mxu0 0.0
        %1547 = vmatprep.subr.mxu0 0.0
        %1548 = vmatpush1.msra.mxu0 0.0
        %1549 = vmatprep.subr.mxu0 0.0
        %1550 = vmatpush1.msra.mxu0 0.0
        %1551 = vmatprep.subr.mxu0 0.0
        %1552 = vmatpush1.msra.mxu0 0.0
        %1553 = vmatprep.subr.mxu0 0.0
        %1554 = vmatpush1.msra.mxu0 0.0
        %1555 = vmatprep.subr.mxu0 0.0
        %1556 = vmatpush1.msra.mxu0 0.0
        %1557 = vmatprep.subr.mxu0 0.0
        %1558 = vmatpush1.msra.mxu0 0.0
        %1559 = vmatprep.mubr.f32.mxu0 0.0
        %1560 = vmatmul.mubr.f32.gmra.mrb[0].mxu0 %v1493
        %v1561 = vpop.f32.mrb[0].mxu0
        %v1562 = vadd.f32 0.0, %v1561
        %v1563 = vpop.f32.mrb[0].mxu0
        %1564 = vdwg.mxu0
        %v1565 = vadd.f32 %v1328, %v1562
        %v1566 = vadd.f32 %v618, %v1565
        %v1567 = vld [vmem:[%s6] sm:$0x1]
        %v1569 = vlaneseq
        %v1570 = vshrl.u32 %v1569, 7
        %v1571 = vsub.s32 0, %v1570
        %v1572 = vrot.slane %v1567, %v1571
        %v1574 = vadd.f32 %v1566, %v1572
        %v1575 = vld [vmem:[%s7] sm:$0x1]
        %v1576 = vld [vmem:[%s8] sm:$0x1]
        %vm1577 = vcmask 261120
        %v1578 = vsel %vm1577, %v1574, 0.0
        %1579 = vadd.xlane.f32.xlu0 %v1578
        %v1580 = vpop.xlane.xlu0 %1579
        %v1581 = vrcp.pop 32.0
        %v1582 = vmul.f32 %v1580, %v1581
        %v1583 = vsub.f32 %v1574, %v1582
        %v1584 = vmul.f32 %v1583, %v1583
        %v1585 = vsel %vm1577, %v1584, 0.0
        %1586 = vadd.xlane.f32.xlu0 %v1585
        %v1587 = vpop.xlane.xlu0 %1586
        %v1588 = vmul.f32 %v1587, %v1581
        %v1589 = vadd.f32 %v1588, 1e-05
        %v1590 = vrsqrt.pop %v1589
        %v1591 = vmul.f32 %v1583, %v1590
        %v1593 = vlaneseq
        %v1594 = vshrl.u32 %v1593, 7
        %v1595 = vsub.s32 0, %v1594
        %v1596 = vrot.slane %v1575, %v1595
        %v1598 = vmul.f32 %v1591, %v1596
        %v1600 = vlaneseq
        %v1601 = vshrl.u32 %v1600, 7
        %v1602 = vsub.s32 0, %v1601
        %v1603 = vrot.slane %v1576, %v1602
        %v1605 = vadd.f32 %v1598, %v1603
        %v1606 = vld [vmem:[%s9] sm:$0xff]
        %v1607 = vld [vmem:[%s9 + $0x8] sm:$0xff]
        %v1608 = vld [vmem:[%s9 + $0x10] sm:$0xff]
        %v1609 = vld [vmem:[%s9 + $0x18] sm:$0xff]
        %v1610 = vld [vmem:[%s10] sm:$0x1]
        %v1612 = vlaneseq
        %v1613 = vshrl.u32 %v1612, 7
        %v1614 = vsub.s32 0, %v1613
        %v1615 = vrot.slane %v1610, %v1614
        %v1618 = vsel %vm1577, %v1605, 0
        %1620 = vmatprep.subr.mxu0 0.0
        %1621 = vmatpush1.msra.mxu0 %v1606
        %1622 = vmatprep.subr.mxu0 0.0
        %1623 = vmatpush1.msra.mxu0 %v1607
        %1624 = vmatprep.subr.mxu0 0.0
        %1625 = vmatpush1.msra.mxu0 %v1608
        %1626 = vmatprep.subr.mxu0 0.0
        %1627 = vmatpush1.msra.mxu0 %v1609
        %1628 = vmatprep.subr.mxu0 0.0
        %1629 = vmatpush1.msra.mxu0 0.0
        %1630 = vmatprep.subr.mxu0 0.0
        %1631 = vmatpush1.msra.mxu0 0.0
        %1632 = vmatprep.subr.mxu0 0.0
        %1633 = vmatpush1.msra.mxu0 0.0
        %1634 = vmatprep.subr.mxu0 0.0
        %1635 = vmatpush1.msra.mxu0 0.0
        %1636 = vmatprep.subr.mxu0 0.0
        %1637 = vmatpush1.msra.mxu0 0.0
        %1638 = vmatprep.subr.mxu0 0.0
        %1639 = vmatpush1.msra.mxu0 0.0
        %1640 = vmatprep.subr.mxu0 0.0
        %1641 = vmatpush1.msra.mxu0 0.0
        %1642 = vmatprep.subr.mxu0 0.0
        %1643 = vmatpush1.msra.mxu0 0.0
        %1644 = vmatprep.subr.mxu0 0.0
        %1645 = vmatpush1.msra.mxu0 0.0
        %1646 = vmatprep.subr.mxu0 0.0
        %1647 = vmatpush1.msra.mxu0 0.0
        %1648 = vmatprep.subr.mxu0 0.0
        %1649 = vmatpush1.msra.mxu0 0.0
        %1650 = vmatprep.subr.mxu0 0.0
        %1651 = vmatpush1.msra.mxu0 0.0
        %1652 = vmatprep.subr.mxu0 0.0
        %1653 = vmatpush1.msra.mxu0 0.0
        %1654 = vmatprep.subr.mxu0 0.0
        %1655 = vmatpush1.msra.mxu0 0.0
        %1656 = vmatprep.subr.mxu0 0.0
        %1657 = vmatpush1.msra.mxu0 0.0
        %1658 = vmatprep.subr.mxu0 0.0
        %1659 = vmatpush1.msra.mxu0 0.0
        %1660 = vmatprep.subr.mxu0 0.0
        %1661 = vmatpush1.msra.mxu0 0.0
        %1662 = vmatprep.subr.mxu0 0.0
        %1663 = vmatpush1.msra.mxu0 0.0
        %1664 = vmatprep.subr.mxu0 0.0
        %1665 = vmatpush1.msra.mxu0 0.0
        %1666 = vmatprep.subr.mxu0 0.0
        %1667 = vmatpush1.msra.mxu0 0.0
        %1668 = vmatprep.subr.mxu0 0.0
        %1669 = vmatpush1.msra.mxu0 0.0
        %1670 = vmatprep.subr.mxu0 0.0
        %1671 = vmatpush1.msra.mxu0 0.0
        %1672 = vmatprep.subr.mxu0 0.0
        %1673 = vmatpush1.msra.mxu0 0.0
        %1674 = vmatprep.subr.mxu0 0.0
        %1675 = vmatpush1.msra.mxu0 0.0
        %1676 = vmatprep.subr.mxu0 0.0
        %1677 = vmatpush1.msra.mxu0 0.0
        %1678 = vmatprep.subr.mxu0 0.0
        %1679 = vmatpush1.msra.mxu0 0.0
        %1680 = vmatprep.subr.mxu0 0.0
        %1681 = vmatpush1.msra.mxu0 0.0
        %1682 = vmatprep.subr.mxu0 0.0
        %1683 = vmatpush1.msra.mxu0 0.0
        %1684 = vmatprep.mubr.f32.mxu0 0.0
        %1685 = vmatmul.mubr.f32.gmra.mrb[0].mxu0 %v1618
        %v1686 = vpop.f32.mrb[0].mxu0
        %v1687 = vadd.f32 %v1615, %v1686
        %v1688 = vpop.f32.mrb[0].mxu0
        %1689 = vdwg.mxu0
        %v1690 = vmul.f32 %v1687, 0.5
        %v1691 = vmul.f32 %v1687, 0.70710677
        %v1692 = verf.f32.pop %v1691
        %v1693 = vadd.f32 %v1692, 1.0
        %v1694 = vmul.f32 %v1690, %v1693
        %v1695 = vld [vmem:[%s11] sm:$0xff]
        %v1696 = vld [vmem:[%s11 + $0x8] sm:$0xff]
        %v1697 = vld [vmem:[%s11 + $0x10] sm:$0xff]
        %v1698 = vld [vmem:[%s11 + $0x18] sm:$0xff]
        %v1699 = vld [vmem:[%s11 + $0x20] sm:$0xff]
        %v1700 = vld [vmem:[%s11 + $0x28] sm:$0xff]
        %v1701 = vld [vmem:[%s11 + $0x30] sm:$0xff]
        %v1702 = vld [vmem:[%s11 + $0x38] sm:$0xff]
        %v1703 = vld [vmem:[%s11 + $0x40] sm:$0xff]
        %v1704 = vld [vmem:[%s11 + $0x48] sm:$0xff]
        %v1705 = vld [vmem:[%s11 + $0x50] sm:$0xff]
        %v1706 = vld [vmem:[%s11 + $0x58] sm:$0xff]
        %v1707 = vld [vmem:[%s11 + $0x60] sm:$0xff]
        %v1708 = vld [vmem:[%s11 + $0x68] sm:$0xff]
        %v1709 = vld [vmem:[%s11 + $0x70] sm:$0xff]
        %v1710 = vld [vmem:[%s11 + $0x78] sm:$0xff]
        %1711 = vmatprep.subr.mxu0 0.0
        %1712 = vmatpush1.msra.mxu0 %v1695
        %1713 = vmatprep.subr.mxu0 0.0
        %1714 = vmatpush1.msra.mxu0 %v1696
        %1715 = vmatprep.subr.mxu0 0.0
        %1716 = vmatpush1.msra.mxu0 %v1697
        %1717 = vmatprep.subr.mxu0 0.0
        %1718 = vmatpush1.msra.mxu0 %v1698
        %1719 = vmatprep.subr.mxu0 0.0
        %1720 = vmatpush1.msra.mxu0 %v1699
        %1721 = vmatprep.subr.mxu0 0.0
        %1722 = vmatpush1.msra.mxu0 %v1700
        %1723 = vmatprep.subr.mxu0 0.0
        %1724 = vmatpush1.msra.mxu0 %v1701
        %1725 = vmatprep.subr.mxu0 0.0
        %1726 = vmatpush1.msra.mxu0 %v1702
        %1727 = vmatprep.subr.mxu0 0.0
        %1728 = vmatpush1.msra.mxu0 %v1703
        %1729 = vmatprep.subr.mxu0 0.0
        %1730 = vmatpush1.msra.mxu0 %v1704
        %1731 = vmatprep.subr.mxu0 0.0
        %1732 = vmatpush1.msra.mxu0 %v1705
        %1733 = vmatprep.subr.mxu0 0.0
        %1734 = vmatpush1.msra.mxu0 %v1706
        %1735 = vmatprep.subr.mxu0 0.0
        %1736 = vmatpush1.msra.mxu0 %v1707
        %1737 = vmatprep.subr.mxu0 0.0
        %1738 = vmatpush1.msra.mxu0 %v1708
        %1739 = vmatprep.subr.mxu0 0.0
        %1740 = vmatpush1.msra.mxu0 %v1709
        %1741 = vmatprep.subr.mxu0 0.0
        %1742 = vmatpush1.msra.mxu0 %v1710
        %1743 = vmatprep.subr.mxu0 0.0
        %1744 = vmatpush1.msra.mxu0 0.0
        %1745 = vmatprep.subr.mxu0 0.0
        %1746 = vmatpush1.msra.mxu0 0.0
        %1747 = vmatprep.subr.mxu0 0.0
        %1748 = vmatpush1.msra.mxu0 0.0
        %1749 = vmatprep.subr.mxu0 0.0
        %1750 = vmatpush1.msra.mxu0 0.0
        %1751 = vmatprep.subr.mxu0 0.0
        %1752 = vmatpush1.msra.mxu0 0.0
        %1753 = vmatprep.subr.mxu0 0.0
        %1754 = vmatpush1.msra.mxu0 0.0
        %1755 = vmatprep.subr.mxu0 0.0
        %1756 = vmatpush1.msra.mxu0 0.0
        %1757 = vmatprep.subr.mxu0 0.0
        %1758 = vmatpush1.msra.mxu0 0.0
        %1759 = vmatprep.subr.mxu0 0.0
        %1760 = vmatpush1.msra.mxu0 0.0
        %1761 = vmatprep.subr.mxu0 0.0
        %1762 = vmatpush1.msra.mxu0 0.0
        %1763 = vmatprep.subr.mxu0 0.0
        %1764 = vmatpush1.msra.mxu0 0.0
        %1765 = vmatprep.subr.mxu0 0.0
        %1766 = vmatpush1.msra.mxu0 0.0
        %1767 = vmatprep.subr.mxu0 0.0
        %1768 = vmatpush1.msra.mxu0 0.0
        %1769 = vmatprep.subr.mxu0 0.0
        %1770 = vmatpush1.msra.mxu0 0.0
        %1771 = vmatprep.subr.mxu0 0.0
        %1772 = vmatpush1.msra.mxu0 0.0
        %1773 = vmatprep.subr.mxu0 0.0
        %1774 = vmatpush1.msra.mxu0 0.0
        %1775 = vmatprep.mubr.f32.mxu0 0.0
        %1776 = vmatmul.mubr.f32.gmra.mrb[0].mxu0 %v1694
        %v1777 = vpop.f32.mrb[0].mxu0
        %v1778 = vadd.f32 0.0, %v1777
        %v1779 = vpop.f32.mrb[0].mxu0
        %1780 = vdwg.mxu0
        %v1781 = vadd.f32 %v1574, %v1778
        %v1782 = vld [vmem:[%s12] sm:$0x1]
        %v1784 = vlaneseq
        %v1785 = vshrl.u32 %v1784, 7
        %v1786 = vsub.s32 0, %v1785
        %v1787 = vrot.slane %v1782, %v1786
        %v1789 = vadd.f32 %v1781, %v1787
        %1790 = vst.msk [vmem:[%s445] sm:$0xff] %vm1577, %v1789
        %s1791 = sand.u32 %s327, 1
        %s1792 = scalar_lea.sflag [#allocation6], %s1791
        %s1793 = sand.u32 %s327, 1
        %s1794 = smul.addr %s1793, 8
        %s1795 = scalar_lea.vmem [#allocation5], %s1794
        // Predicated region
        $region77: #{tpu_custom_call.1} parent=71 // pred_check
          %p1796 = pneg %p337
        $region78: #{tpu_custom_call.1} parent=71 // pred_check_branch
          %1798 = sbr.rel (%p1796) target = $region80
        $region79: #{tpu_custom_call.1} parent=71 // pred_region
          %s1800 = ssub.s32 128, 128
          %1801 = vsyncadd %s1792, %s1800
          %s1802 = sadd.s32 %s32, %s31
          %s1803 = smul.addr %s1802, 128
          %s1804 = scalar_lea.hbm %s13, %s1803
          %s1806 = sshll.u32 %s1795, 4
          %s1807 = int_to_ptr.vmem [resolvable:$true] %s1806
          %1809 = dma.vmem_to_hbm [thread:$0]  %s1807, 128, %s1804, %s1792
        $region80: #{tpu_custom_call.1} parent=71 // pred_fallthru
          _
      $region72: #{tpu_custom_call.1} parent=5 // pred_fallthru
        _
      %p1810 = scmp.le.s32.totalorder 2, %s22
      // Predicated region
      $region81: #{tpu_custom_call.1} parent=5 // pred_check
        %p1811 = pneg %p1810
      $region82: #{tpu_custom_call.1} parent=5 // pred_check_branch
        %1813 = sbr.rel (%p1811) target = $region84
      $region83: #{tpu_custom_call.1} parent=5 // pred_region
        %s1814 = ssub.s32 %s22, 2
        // Predicated region
        $region85: #{tpu_custom_call.1} parent=83 // pred_check
          %p1815 = pneg %p343
        $region86: #{tpu_custom_call.1} parent=83 // pred_check_branch
          %1817 = sbr.rel (%p1815) target = $region88
        $region87: #{tpu_custom_call.1} parent=83 // pred_region
          %s1818 = sand.u32 %s328, 1
          %s1819 = scalar_lea.sflag [#allocation6], %s1818
          %s1820 = sand.u32 %s328, 1
          %s1821 = smul.addr %s1820, 8
          %s1822 = scalar_lea.vmem [#allocation5], %s1821
          %1823 = dma.done %s1819, 128
        $region88: #{tpu_custom_call.1} parent=83 // pred_fallthru
          _
      $region84: #{tpu_custom_call.1} parent=5 // pred_fallthru
        _
    $region6: #{tpu_custom_call.1} parent=1 // loop_footer
      %s26 = sadd.s32 1, %s22
    $region7: #{tpu_custom_call.1} parent=1 // loop_footer_branch
      %21 = sbr.rel target = $region3
    $region8: #{tpu_custom_call.1} parent=1 // loop_exit
      _
    %1824 = vsyncpa [#allocation6], 1
    %s1825 = scalar_lea.sflag [#allocation6], 1
    %1826 = vsyncpa %s1825, 1

</llo_original>
